<compile_context>
chip_gen: v7x
topology: tpu7x:2x2x1
jax: 0.10.0
libtpu: 0.0.40
codegen_flags: <defaults>
</compile_context>

<pallas_src>
import math
import numpy as np
import jax
import jax.numpy as jnp
from jax.experimental import pallas as pl
from jax.experimental.pallas import tpu as pltpu


# ----------------------------------------------------------------------------
# Interpolation-matrix construction (PyTorch index/weight formulas).
# Built once, host-side, in float64; cast to float32 only after composition.
# ----------------------------------------------------------------------------
def _compute_scale(in_size, out_size, scale_factor):
    # PyTorch compute_scales_value: 1/scale_factor if given, else in/out.
    if scale_factor is not None:
        return 1.0 / float(scale_factor)
    return float(in_size) / float(out_size)


def nearest_matrix(in_size, out_size, scale_factor=None):
    scale = np.float32(_compute_scale(in_size, out_size, scale_factor))
    dst = np.arange(out_size, dtype=np.float32)
    src = np.clip(np.floor(dst * scale).astype(np.int64), 0, in_size - 1)
    m = np.zeros((out_size, in_size), dtype=np.float64)
    m[np.arange(out_size), src] = 1.0
    return m


def linear_matrix(in_size, out_size, align_corners, scale_factor=None):
    m = np.zeros((out_size, in_size), dtype=np.float64)
    if align_corners:
        scale = 0.0 if out_size <= 1 else (in_size - 1) / (out_size - 1)
        src = np.arange(out_size, dtype=np.float64) * scale
    else:
        scale = _compute_scale(in_size, out_size, scale_factor)
        src = (np.arange(out_size, dtype=np.float64) + 0.5) * scale - 0.5
        src = np.maximum(src, 0.0)
    i0 = np.clip(np.floor(src).astype(np.int64), 0, in_size - 1)
    i1 = np.minimum(i0 + 1, in_size - 1)
    lam = src - i0
    for o in range(out_size):
        m[o, i0[o]] += 1.0 - lam[o]
        m[o, i1[o]] += lam[o]
    return m


def _cubic_conv1(x, A):
    return ((A + 2.0) * x - (A + 3.0)) * x * x + 1.0


def _cubic_conv2(x, A):
    return ((A * x - 5.0 * A) * x + 8.0 * A) * x - 4.0 * A


def cubic_matrix(in_size, out_size, align_corners, scale_factor=None):
    A = -0.75
    m = np.zeros((out_size, in_size), dtype=np.float64)
    if align_corners:
        scale = 0.0 if out_size <= 1 else (in_size - 1) / (out_size - 1)
        src = np.arange(out_size, dtype=np.float64) * scale
    else:
        scale = _compute_scale(in_size, out_size, scale_factor)
        src = (np.arange(out_size, dtype=np.float64) + 0.5) * scale - 0.5  # no clamp for cubic
    for o in range(out_size):
        s = src[o]
        i = int(np.floor(s))
        t = s - i
        ws = (_cubic_conv2(t + 1.0, A), _cubic_conv1(t, A),
              _cubic_conv1(1.0 - t, A), _cubic_conv2(2.0 - t, A))
        for k in range(4):
            idx = min(max(i - 1 + k, 0), in_size - 1)
            m[o, idx] += ws[k]
    return m


def build_matrix(mode, in_size, out_size, align_corners, scale_factor):
    if mode == "nearest":
        return nearest_matrix(in_size, out_size, scale_factor)
    if mode == "linear":
        return linear_matrix(in_size, out_size, align_corners, scale_factor)
    if mode == "cubic":
        return cubic_matrix(in_size, out_size, align_corners, scale_factor)
    raise ValueError(mode)


# ----------------------------------------------------------------------------
# Stage lists matching the PyTorch Model.forward upsample chains.
# Each entry: (mode, size, scale_factor, align_corners)
# ----------------------------------------------------------------------------
X_STAGES = [
    ("nearest", 16, None, False),
    ("nearest", None, 2.0, False),
    ("nearest", 20, None, False),
    ("nearest", None, 4.0, False),
    ("linear", 16, None, False),
    ("linear", None, 2.0, False),
    ("linear", 24, None, True),
    ("linear", None, 3.0, True),
]

Y_STAGES = [
    ("nearest", (16, 16), None, False),
    ("nearest", None, (2.0, 2.0), False),
    ("nearest", (20, 20), None, False),
    ("nearest", None, (4.0, 4.0), False),
    ("nearest", (16, 24), None, False),
    ("nearest", None, (2.0, 3.0), False),
    ("linear", (16, 16), None, False),
    ("linear", None, (2.0, 2.0), False),
    ("linear", (20, 20), None, False),
    ("linear", None, (4.0, 4.0), False),
    ("linear", (16, 24), None, True),
    ("linear", None, (2.0, 3.0), True),
    ("cubic", (16, 16), None, False),
    ("cubic", None, (2.0, 2.0), False),
    ("cubic", (20, 20), None, False),
    ("cubic", None, (4.0, 4.0), False),
    ("cubic", (16, 24), None, True),
    ("cubic", None, (2.0, 3.0), True),
]


def axis_stages(stages, axis):
    out = []
    for mode, size, scale, ac in stages:
        s = None if size is None else size[axis]
        f = None if scale is None else scale[axis]
        out.append((mode, s, f, ac))
    return out


def compose_chain(stages, in_size):
    """Compose all per-stage interpolation matrices into one (out, in) matrix (f64)."""
    M = np.eye(in_size, dtype=np.float64)
    cur = in_size
    for mode, size, scale, ac in stages:
        out = size if size is not None else int(math.floor(cur * scale))
        M = build_matrix(mode, cur, out, ac, scale) @ M
        cur = out
    return M


# ----------------------------------------------------------------------------
# Pallas kernel factory: one call, all matmuls on the MXU, exact-width outputs.
# ----------------------------------------------------------------------------
def make_forward(x_shape, y_shape, w_shape, dtype=jnp.float32):
    Bx, Cx, Wx = x_shape
    By, Cy, Hy, Wy = y_shape
    Bw, Cw, Hw, Ww = w_shape
    BCx, BCy, BCw = Bx * Cx, By * Cy, Bw * Cw

    # --- composed per-axis interpolation matrices (host-side, float64) ---
    Mx = compose_chain(X_STAGES, Wx)                      # (Wox, Wx)
    Mhy = compose_chain(axis_stages(Y_STAGES, 0), Hy)     # (Hoy, Hy)
    Mwy = compose_chain(axis_stages(Y_STAGES, 1), Wy)     # (Woy, Wy)
    How, Wow = int(math.floor(Hw * 1.499)), int(math.floor(Ww * 1.499))
    Mhw = nearest_matrix(Hw, How, 1.499)                  # (How, Hw)
    Mww = nearest_matrix(Ww, Wow, 1.499)                  # (Wow, Ww)
    Wox, Hoy, Woy = Mx.shape[0], Mhy.shape[0], Mwy.shape[0]

    # --- device constants (exact widths, no lane padding) ---
    mxT = jnp.asarray(Mx.T.astype(np.float32))            # (Wx,  Wox)
    mhy = jnp.asarray(Mhy.astype(np.float32))             # (Hoy, Hy)
    mwyT = jnp.asarray(Mwy.T.astype(np.float32))          # (Wy,  Woy)
    mhw = jnp.asarray(Mhw.astype(np.float32))             # (How, Hw)
    mwwT = jnp.asarray(Mww.T.astype(np.float32))          # (Ww,  Wow)

    def kernel(x_ref, mxT_ref,
               y_ref, mhy_ref, mwyT_ref,
               w_ref, mhw_ref, mwwT_ref,
               xo_ref, yo_ref, wo_ref):
        f32 = jnp.float32
        # --- x chain: (BCx, Wx) @ (Wx, Wox) ---
        xo_ref[...] = jnp.dot(x_ref[...], mxT_ref[...],
                              preferred_element_type=f32).astype(xo_ref.dtype)

        # --- y chain: H-pass first (small K), then W-pass; unrolled over BC ---
        mhy_m = mhy_ref[...]
        mwyT_m = mwyT_ref[...]
        for bc in range(BCy):                      # static unroll (tiny BC)
            th = jnp.dot(mhy_m, y_ref[bc], preferred_element_type=f32)   # (Hoy, Wy)
            yo_ref[bc] = jnp.dot(th, mwyT_m,
                                 preferred_element_type=f32).astype(yo_ref.dtype)

        # --- w chain: same H-first two-pass pattern ---
        mhw_m = mhw_ref[...]
        mwwT_m = mwwT_ref[...]
        for bc in range(BCw):                      # static unroll
            th = jnp.dot(mhw_m, w_ref[bc], preferred_element_type=f32)   # (How, Ww)
            wo_ref[bc] = jnp.dot(th, mwwT_m,
                                 preferred_element_type=f32).astype(wo_ref.dtype)

    def _full(shape):
        return pl.BlockSpec(shape, lambda i, n=len(shape): (0,) * n)

    call = pl.pallas_call(
        kernel,
        out_shape=(
            jax.ShapeDtypeStruct((BCx, Wox), dtype),
            jax.ShapeDtypeStruct((BCy, Hoy, Woy), dtype),
            jax.ShapeDtypeStruct((BCw, How, Wow), dtype),
        ),
        grid=(1,),
        in_specs=[
            _full((BCx, Wx)), _full((Wx, Wox)),
            _full((BCy, Hy, Wy)), _full((Hoy, Hy)), _full((Wy, Woy)),
            _full((BCw, Hw, Ww)), _full((How, Hw)), _full((Ww, Wow)),
        ],
        out_specs=(
            _full((BCx, Wox)),
            _full((BCy, Hoy, Woy)),
            _full((BCw, How, Wow)),
        ),
        compiler_params=pltpu.CompilerParams(dimension_semantics=("arbitrary",)),
    )

    @jax.jit
    def forward(x, y, w):
        xo, yo, wo = call(
            x.reshape(BCx, Wx), mxT,
            y.reshape(BCy, Hy, Wy), mhy, mwyT,
            w.reshape(BCw, Hw, Ww), mhw, mwwT,
        )
        # Only batch/channel-dim reshapes remain (no data movement, no slices).
        return (xo.reshape(Bx, Cx, Wox),
                yo.reshape(By, Cy, Hoy, Woy),
                wo.reshape(Bw, Cw, How, Wow))

    return forward


# ----------------------------------------------------------------------------
# Pure-numpy per-stage reference (float64) for a correctness sanity check.
# TODO(synk): validate the nearest/linear/cubic index formulas once against
# real torch F.upsample outputs (recompute_scale_factor / legacy-nearest ties).
# ----------------------------------------------------------------------------
def _reference_forward_np(x, y, w):
    x = np.asarray(x, np.float64)
    y = np.asarray(y, np.float64)
    w = np.asarray(w, np.float64)
    for mode, size, scale, ac in X_STAGES:
        cur = x.shape[-1]
        out = size if size is not None else int(math.floor(cur * scale))
        m = build_matrix(mode, cur, out, ac, scale)
        x = np.einsum("ow,bcw->bco", m, x)
    for mode, size, scale, ac in Y_STAGES:
        H, W = y.shape[-2:]
        sh = None if scale is None else scale[0]
        sw = None if scale is None else scale[1]
        oh = size[0] if size is not None else int(math.floor(H * sh))
        ow = size[1] if size is not None else int(math.floor(W * sw))
        mh = build_matrix(mode, H, oh, ac, sh)
        mw = build_matrix(mode, W, ow, ac, sw)
        y = np.einsum("oh,bchw,pw->bcop", mh, y, mw)
    H, W = w.shape[-2:]
    mh = nearest_matrix(H, int(math.floor(H * 1.499)), 1.499)
    mw = nearest_matrix(W, int(math.floor(W * 1.499)), 1.499)
    w = np.einsum("oh,bchw,pw->bcop", mh, w, mw)
    return x, y, w


if __name__ == "__main__":
    key = jax.random.PRNGKey(0)
    k1, k2, k3 = jax.random.split(key, 3)
    x = jax.random.normal(k1, (1, 2, 32), dtype=jnp.float32)
    y = jax.random.normal(k2, (1, 3, 32, 32), dtype=jnp.float32)
    w = jax.random.normal(k3, (1, 8, 12, 12), dtype=jnp.float32)

    forward = make_forward(x.shape, y.shape, w.shape)
    xo, yo, wo = forward(x, y, w)
    jax.block_until_ready((xo, yo, wo))

    assert xo.shape == (1, 2, 72), xo.shape
    assert yo.shape == (1, 3, 32, 72), yo.shape
    assert wo.shape == (1, 8, 17, 17), wo.shape
    assert xo.dtype == yo.dtype == wo.dtype == jnp.float32

    xr, yr, wr = _reference_forward_np(np.asarray(x), np.asarray(y), np.asarray(w))
    np.testing.assert_allclose(np.asarray(xo), xr, rtol=5e-2, atol=5e-2)
    np.testing.assert_allclose(np.asarray(yo), yr, rtol=5e-2, atol=5e-2)
    np.testing.assert_allclose(np.asarray(wo), wr, rtol=5e-2, atol=5e-2)

    print("KERNEL_OK")
</pallas_src>

<mosaic_0001>
module attributes {stable_mosaic.version = 11 : i64} {
  func.func @kernel(%arg0: i32, %arg1: memref<2x32xf32, #tpu.memory_space<vmem>>, %arg2: memref<32x72xf32, #tpu.memory_space<vmem>>, %arg3: memref<3x32x32xf32, #tpu.memory_space<vmem>>, %arg4: memref<32x32xf32, #tpu.memory_space<vmem>>, %arg5: memref<32x72xf32, #tpu.memory_space<vmem>>, %arg6: memref<8x12x12xf32, #tpu.memory_space<vmem>>, %arg7: memref<17x12xf32, #tpu.memory_space<vmem>>, %arg8: memref<12x17xf32, #tpu.memory_space<vmem>>, %arg9: memref<2x72xf32, #tpu.memory_space<vmem>>, %arg10: memref<3x32x72xf32, #tpu.memory_space<vmem>>, %arg11: memref<8x17x17xf32, #tpu.memory_space<vmem>>) attributes {dimension_semantics = [#tpu.dimension_semantics<arbitrary>], iteration_bounds = array<i64: 1>, scalar_prefetch = 0 : i64, scratch_operands = 0 : i64, tpu.core_type = #tpu.core_type<tc>, window_params = [{pipeline_mode = #tpu.pipeline_mode<synchronous>, transform_indices = @transform_0, window_bounds = array<i64: 2, 32>}, {pipeline_mode = #tpu.pipeline_mode<synchronous>, transform_indices = @transform_1, window_bounds = array<i64: 32, 72>}, {pipeline_mode = #tpu.pipeline_mode<synchronous>, transform_indices = @transform_2, window_bounds = array<i64: 3, 32, 32>}, {pipeline_mode = #tpu.pipeline_mode<synchronous>, transform_indices = @transform_3, window_bounds = array<i64: 32, 32>}, {pipeline_mode = #tpu.pipeline_mode<synchronous>, transform_indices = @transform_4, window_bounds = array<i64: 32, 72>}, {pipeline_mode = #tpu.pipeline_mode<synchronous>, transform_indices = @transform_5, window_bounds = array<i64: 8, 12, 12>}, {pipeline_mode = #tpu.pipeline_mode<synchronous>, transform_indices = @transform_6, window_bounds = array<i64: 17, 12>}, {pipeline_mode = #tpu.pipeline_mode<synchronous>, transform_indices = @transform_7, window_bounds = array<i64: 12, 17>}, {pipeline_mode = #tpu.pipeline_mode<synchronous>, transform_indices = @transform_8, window_bounds = array<i64: 2, 72>}, {pipeline_mode = #tpu.pipeline_mode<synchronous>, transform_indices = @transform_9, window_bounds = array<i64: 3, 32, 72>}, {pipeline_mode = #tpu.pipeline_mode<synchronous>, transform_indices = @transform_10, window_bounds = array<i64: 8, 17, 17>}]} {
    %c0 = arith.constant 0 : index
    %c0_0 = arith.constant 0 : index
    %0 = vector.load %arg1[%c0, %c0_0] : memref<2x32xf32, #tpu.memory_space<vmem>>, vector<2x32xf32>
    %c0_1 = arith.constant 0 : index
    %c0_2 = arith.constant 0 : index
    %1 = vector.load %arg2[%c0_1, %c0_2] : memref<32x72xf32, #tpu.memory_space<vmem>>, vector<32x72xf32>
    %cst = arith.constant dense<0.000000e+00> : vector<2x72xf32>
    %2 = tpu.matmul %0, %1, %cst {dimension_numbers = #tpu.dot_dimension_numbers<[1], [0], [0], [1], [0, 0, 1, 1], [], []>} : vector<2x32xf32>, vector<32x72xf32>, vector<2x72xf32> -> vector<2x72xf32>
    %c0_3 = arith.constant 0 : index
    %c0_4 = arith.constant 0 : index
    %3 = vector.load %arg9[%c0_3, %c0_4] : memref<2x72xf32, #tpu.memory_space<vmem>>, vector<2x72xf32>
    tpu.vector_store %arg9[%c0_3, %c0_4], %2 {strides = array<i32>} : memref<2x72xf32, #tpu.memory_space<vmem>>, vector<2x72xf32>,
    %c0_5 = arith.constant 0 : index
    %c0_6 = arith.constant 0 : index
    %4 = vector.load %arg4[%c0_5, %c0_6] : memref<32x32xf32, #tpu.memory_space<vmem>>, vector<32x32xf32>
    %c0_7 = arith.constant 0 : index
    %c0_8 = arith.constant 0 : index
    %5 = vector.load %arg5[%c0_7, %c0_8] : memref<32x72xf32, #tpu.memory_space<vmem>>, vector<32x72xf32>
    %c0_9 = arith.constant 0 : index
    %c0_10 = arith.constant 0 : index
    %c0_11 = arith.constant 0 : index
    %6 = vector.load %arg3[%c0_9, %c0_10, %c0_11] : memref<3x32x32xf32, #tpu.memory_space<vmem>>, vector<1x32x32xf32>
    %7 = vector.shape_cast %6 : vector<1x32x32xf32> to vector<32x32xf32>
    %cst_12 = arith.constant dense<0.000000e+00> : vector<32x32xf32>
    %8 = tpu.matmul %4, %7, %cst_12 {dimension_numbers = #tpu.dot_dimension_numbers<[1], [0], [0], [1], [0, 0, 1, 1], [], []>} : vector<32x32xf32>, vector<32x32xf32>, vector<32x32xf32> -> vector<32x32xf32>
    %cst_13 = arith.constant dense<0.000000e+00> : vector<32x72xf32>
    %9 = tpu.matmul %8, %5, %cst_13 {dimension_numbers = #tpu.dot_dimension_numbers<[1], [0], [0], [1], [0, 0, 1, 1], [], []>} : vector<32x32xf32>, vector<32x72xf32>, vector<32x72xf32> -> vector<32x72xf32>
    %c0_14 = arith.constant 0 : index
    %c0_15 = arith.constant 0 : index
    %c0_16 = arith.constant 0 : index
    %10 = vector.load %arg10[%c0_14, %c0_15, %c0_16] : memref<3x32x72xf32, #tpu.memory_space<vmem>>, vector<1x32x72xf32>
    %11 = vector.shape_cast %10 : vector<1x32x72xf32> to vector<32x72xf32>
    %12 = vector.shape_cast %9 : vector<32x72xf32> to vector<1x32x72xf32>
    tpu.vector_store %arg10[%c0_14, %c0_15, %c0_16], %12 {strides = array<i32>} : memref<3x32x72xf32, #tpu.memory_space<vmem>>, vector<1x32x72xf32>,
    %c1 = arith.constant 1 : index
    %c0_17 = arith.constant 0 : index
    %c0_18 = arith.constant 0 : index
    %13 = vector.load %arg3[%c1, %c0_17, %c0_18] : memref<3x32x32xf32, #tpu.memory_space<vmem>>, vector<1x32x32xf32>
    %14 = vector.shape_cast %13 : vector<1x32x32xf32> to vector<32x32xf32>
    %cst_19 = arith.constant dense<0.000000e+00> : vector<32x32xf32>
    %15 = tpu.matmul %4, %14, %cst_19 {dimension_numbers = #tpu.dot_dimension_numbers<[1], [0], [0], [1], [0, 0, 1, 1], [], []>} : vector<32x32xf32>, vector<32x32xf32>, vector<32x32xf32> -> vector<32x32xf32>
    %cst_20 = arith.constant dense<0.000000e+00> : vector<32x72xf32>
    %16 = tpu.matmul %15, %5, %cst_20 {dimension_numbers = #tpu.dot_dimension_numbers<[1], [0], [0], [1], [0, 0, 1, 1], [], []>} : vector<32x32xf32>, vector<32x72xf32>, vector<32x72xf32> -> vector<32x72xf32>
    %c1_21 = arith.constant 1 : index
    %c0_22 = arith.constant 0 : index
    %c0_23 = arith.constant 0 : index
    %17 = vector.load %arg10[%c1_21, %c0_22, %c0_23] : memref<3x32x72xf32, #tpu.memory_space<vmem>>, vector<1x32x72xf32>
    %18 = vector.shape_cast %17 : vector<1x32x72xf32> to vector<32x72xf32>
    %19 = vector.shape_cast %16 : vector<32x72xf32> to vector<1x32x72xf32>
    tpu.vector_store %arg10[%c1_21, %c0_22, %c0_23], %19 {strides = array<i32>} : memref<3x32x72xf32, #tpu.memory_space<vmem>>, vector<1x32x72xf32>,
    %c2 = arith.constant 2 : index
    %c0_24 = arith.constant 0 : index
    %c0_25 = arith.constant 0 : index
    %20 = vector.load %arg3[%c2, %c0_24, %c0_25] : memref<3x32x32xf32, #tpu.memory_space<vmem>>, vector<1x32x32xf32>
    %21 = vector.shape_cast %20 : vector<1x32x32xf32> to vector<32x32xf32>
    %cst_26 = arith.constant dense<0.000000e+00> : vector<32x32xf32>
    %22 = tpu.matmul %4, %21, %cst_26 {dimension_numbers = #tpu.dot_dimension_numbers<[1], [0], [0], [1], [0, 0, 1, 1], [], []>} : vector<32x32xf32>, vector<32x32xf32>, vector<32x32xf32> -> vector<32x32xf32>
    %cst_27 = arith.constant dense<0.000000e+00> : vector<32x72xf32>
    %23 = tpu.matmul %22, %5, %cst_27 {dimension_numbers = #tpu.dot_dimension_numbers<[1], [0], [0], [1], [0, 0, 1, 1], [], []>} : vector<32x32xf32>, vector<32x72xf32>, vector<32x72xf32> -> vector<32x72xf32>
    %c2_28 = arith.constant 2 : index
    %c0_29 = arith.constant 0 : index
    %c0_30 = arith.constant 0 : index
    %24 = vector.load %arg10[%c2_28, %c0_29, %c0_30] : memref<3x32x72xf32, #tpu.memory_space<vmem>>, vector<1x32x72xf32>
    %25 = vector.shape_cast %24 : vector<1x32x72xf32> to vector<32x72xf32>
    %26 = vector.shape_cast %23 : vector<32x72xf32> to vector<1x32x72xf32>
    tpu.vector_store %arg10[%c2_28, %c0_29, %c0_30], %26 {strides = array<i32>} : memref<3x32x72xf32, #tpu.memory_space<vmem>>, vector<1x32x72xf32>,
    %c0_31 = arith.constant 0 : index
    %c0_32 = arith.constant 0 : index
    %27 = vector.load %arg7[%c0_31, %c0_32] : memref<17x12xf32, #tpu.memory_space<vmem>>, vector<17x12xf32>
    %c0_33 = arith.constant 0 : index
    %c0_34 = arith.constant 0 : index
    %28 = vector.load %arg8[%c0_33, %c0_34] : memref<12x17xf32, #tpu.memory_space<vmem>>, vector<12x17xf32>
    %c0_35 = arith.constant 0 : index
    %c0_36 = arith.constant 0 : index
    %c0_37 = arith.constant 0 : index
    %29 = vector.load %arg6[%c0_35, %c0_36, %c0_37] : memref<8x12x12xf32, #tpu.memory_space<vmem>>, vector<1x12x12xf32>
    %30 = vector.shape_cast %29 : vector<1x12x12xf32> to vector<12x12xf32>
    %cst_38 = arith.constant dense<0.000000e+00> : vector<17x12xf32>
    %31 = tpu.matmul %27, %30, %cst_38 {dimension_numbers = #tpu.dot_dimension_numbers<[1], [0], [0], [1], [0, 0, 1, 1], [], []>} : vector<17x12xf32>, vector<12x12xf32>, vector<17x12xf32> -> vector<17x12xf32>
    %cst_39 = arith.constant dense<0.000000e+00> : vector<17x17xf32>
    %32 = tpu.matmul %31, %28, %cst_39 {dimension_numbers = #tpu.dot_dimension_numbers<[1], [0], [0], [1], [0, 0, 1, 1], [], []>} : vector<17x12xf32>, vector<12x17xf32>, vector<17x17xf32> -> vector<17x17xf32>
    %c0_40 = arith.constant 0 : index
    %c0_41 = arith.constant 0 : index
    %c0_42 = arith.constant 0 : index
    %33 = vector.load %arg11[%c0_40, %c0_41, %c0_42] : memref<8x17x17xf32, #tpu.memory_space<vmem>>, vector<1x17x17xf32>
    %34 = vector.shape_cast %33 : vector<1x17x17xf32> to vector<17x17xf32>
    %35 = vector.shape_cast %32 : vector<17x17xf32> to vector<1x17x17xf32>
    tpu.vector_store %arg11[%c0_40, %c0_41, %c0_42], %35 {strides = array<i32>} : memref<8x17x17xf32, #tpu.memory_space<vmem>>, vector<1x17x17xf32>,
    %c1_43 = arith.constant 1 : index
    %c0_44 = arith.constant 0 : index
    %c0_45 = arith.constant 0 : index
    %36 = vector.load %arg6[%c1_43, %c0_44, %c0_45] : memref<8x12x12xf32, #tpu.memory_space<vmem>>, vector<1x12x12xf32>
    %37 = vector.shape_cast %36 : vector<1x12x12xf32> to vector<12x12xf32>
    %cst_46 = arith.constant dense<0.000000e+00> : vector<17x12xf32>
    %38 = tpu.matmul %27, %37, %cst_46 {dimension_numbers = #tpu.dot_dimension_numbers<[1], [0], [0], [1], [0, 0, 1, 1], [], []>} : vector<17x12xf32>, vector<12x12xf32>, vector<17x12xf32> -> vector<17x12xf32>
    %cst_47 = arith.constant dense<0.000000e+00> : vector<17x17xf32>
    %39 = tpu.matmul %38, %28, %cst_47 {dimension_numbers = #tpu.dot_dimension_numbers<[1], [0], [0], [1], [0, 0, 1, 1], [], []>} : vector<17x12xf32>, vector<12x17xf32>, vector<17x17xf32> -> vector<17x17xf32>
    %c1_48 = arith.constant 1 : index
    %c0_49 = arith.constant 0 : index
    %c0_50 = arith.constant 0 : index
    %40 = vector.load %arg11[%c1_48, %c0_49, %c0_50] : memref<8x17x17xf32, #tpu.memory_space<vmem>>, vector<1x17x17xf32>
    %41 = vector.shape_cast %40 : vector<1x17x17xf32> to vector<17x17xf32>
    %42 = vector.shape_cast %39 : vector<17x17xf32> to vector<1x17x17xf32>
    tpu.vector_store %arg11[%c1_48, %c0_49, %c0_50], %42 {strides = array<i32>} : memref<8x17x17xf32, #tpu.memory_space<vmem>>, vector<1x17x17xf32>,
    %c2_51 = arith.constant 2 : index
    %c0_52 = arith.constant 0 : index
    %c0_53 = arith.constant 0 : index
    %43 = vector.load %arg6[%c2_51, %c0_52, %c0_53] : memref<8x12x12xf32, #tpu.memory_space<vmem>>, vector<1x12x12xf32>
    %44 = vector.shape_cast %43 : vector<1x12x12xf32> to vector<12x12xf32>
    %cst_54 = arith.constant dense<0.000000e+00> : vector<17x12xf32>
    %45 = tpu.matmul %27, %44, %cst_54 {dimension_numbers = #tpu.dot_dimension_numbers<[1], [0], [0], [1], [0, 0, 1, 1], [], []>} : vector<17x12xf32>, vector<12x12xf32>, vector<17x12xf32> -> vector<17x12xf32>
    %cst_55 = arith.constant dense<0.000000e+00> : vector<17x17xf32>
    %46 = tpu.matmul %45, %28, %cst_55 {dimension_numbers = #tpu.dot_dimension_numbers<[1], [0], [0], [1], [0, 0, 1, 1], [], []>} : vector<17x12xf32>, vector<12x17xf32>, vector<17x17xf32> -> vector<17x17xf32>
    %c2_56 = arith.constant 2 : index
    %c0_57 = arith.constant 0 : index
    %c0_58 = arith.constant 0 : index
    %47 = vector.load %arg11[%c2_56, %c0_57, %c0_58] : memref<8x17x17xf32, #tpu.memory_space<vmem>>, vector<1x17x17xf32>
    %48 = vector.shape_cast %47 : vector<1x17x17xf32> to vector<17x17xf32>
    %49 = vector.shape_cast %46 : vector<17x17xf32> to vector<1x17x17xf32>
    tpu.vector_store %arg11[%c2_56, %c0_57, %c0_58], %49 {strides = array<i32>} : memref<8x17x17xf32, #tpu.memory_space<vmem>>, vector<1x17x17xf32>,
    %c3 = arith.constant 3 : index
    %c0_59 = arith.constant 0 : index
    %c0_60 = arith.constant 0 : index
    %50 = vector.load %arg6[%c3, %c0_59, %c0_60] : memref<8x12x12xf32, #tpu.memory_space<vmem>>, vector<1x12x12xf32>
    %51 = vector.shape_cast %50 : vector<1x12x12xf32> to vector<12x12xf32>
    %cst_61 = arith.constant dense<0.000000e+00> : vector<17x12xf32>
    %52 = tpu.matmul %27, %51, %cst_61 {dimension_numbers = #tpu.dot_dimension_numbers<[1], [0], [0], [1], [0, 0, 1, 1], [], []>} : vector<17x12xf32>, vector<12x12xf32>, vector<17x12xf32> -> vector<17x12xf32>
    %cst_62 = arith.constant dense<0.000000e+00> : vector<17x17xf32>
    %53 = tpu.matmul %52, %28, %cst_62 {dimension_numbers = #tpu.dot_dimension_numbers<[1], [0], [0], [1], [0, 0, 1, 1], [], []>} : vector<17x12xf32>, vector<12x17xf32>, vector<17x17xf32> -> vector<17x17xf32>
    %c3_63 = arith.constant 3 : index
    %c0_64 = arith.constant 0 : index
    %c0_65 = arith.constant 0 : index
    %54 = vector.load %arg11[%c3_63, %c0_64, %c0_65] : memref<8x17x17xf32, #tpu.memory_space<vmem>>, vector<1x17x17xf32>
    %55 = vector.shape_cast %54 : vector<1x17x17xf32> to vector<17x17xf32>
    %56 = vector.shape_cast %53 : vector<17x17xf32> to vector<1x17x17xf32>
    tpu.vector_store %arg11[%c3_63, %c0_64, %c0_65], %56 {strides = array<i32>} : memref<8x17x17xf32, #tpu.memory_space<vmem>>, vector<1x17x17xf32>,
    %c4 = arith.constant 4 : index
    %c0_66 = arith.constant 0 : index
    %c0_67 = arith.constant 0 : index
    %57 = vector.load %arg6[%c4, %c0_66, %c0_67] : memref<8x12x12xf32, #tpu.memory_space<vmem>>, vector<1x12x12xf32>
    %58 = vector.shape_cast %57 : vector<1x12x12xf32> to vector<12x12xf32>
    %cst_68 = arith.constant dense<0.000000e+00> : vector<17x12xf32>
    %59 = tpu.matmul %27, %58, %cst_68 {dimension_numbers = #tpu.dot_dimension_numbers<[1], [0], [0], [1], [0, 0, 1, 1], [], []>} : vector<17x12xf32>, vector<12x12xf32>, vector<17x12xf32> -> vector<17x12xf32>
    %cst_69 = arith.constant dense<0.000000e+00> : vector<17x17xf32>
    %60 = tpu.matmul %59, %28, %cst_69 {dimension_numbers = #tpu.dot_dimension_numbers<[1], [0], [0], [1], [0, 0, 1, 1], [], []>} : vector<17x12xf32>, vector<12x17xf32>, vector<17x17xf32> -> vector<17x17xf32>
    %c4_70 = arith.constant 4 : index
    %c0_71 = arith.constant 0 : index
    %c0_72 = arith.constant 0 : index
    %61 = vector.load %arg11[%c4_70, %c0_71, %c0_72] : memref<8x17x17xf32, #tpu.memory_space<vmem>>, vector<1x17x17xf32>
    %62 = vector.shape_cast %61 : vector<1x17x17xf32> to vector<17x17xf32>
    %63 = vector.shape_cast %60 : vector<17x17xf32> to vector<1x17x17xf32>
    tpu.vector_store %arg11[%c4_70, %c0_71, %c0_72], %63 {strides = array<i32>} : memref<8x17x17xf32, #tpu.memory_space<vmem>>, vector<1x17x17xf32>,
    %c5 = arith.constant 5 : index
    %c0_73 = arith.constant 0 : index
    %c0_74 = arith.constant 0 : index
    %64 = vector.load %arg6[%c5, %c0_73, %c0_74] : memref<8x12x12xf32, #tpu.memory_space<vmem>>, vector<1x12x12xf32>
    %65 = vector.shape_cast %64 : vector<1x12x12xf32> to vector<12x12xf32>
    %cst_75 = arith.constant dense<0.000000e+00> : vector<17x12xf32>
    %66 = tpu.matmul %27, %65, %cst_75 {dimension_numbers = #tpu.dot_dimension_numbers<[1], [0], [0], [1], [0, 0, 1, 1], [], []>} : vector<17x12xf32>, vector<12x12xf32>, vector<17x12xf32> -> vector<17x12xf32>
    %cst_76 = arith.constant dense<0.000000e+00> : vector<17x17xf32>
    %67 = tpu.matmul %66, %28, %cst_76 {dimension_numbers = #tpu.dot_dimension_numbers<[1], [0], [0], [1], [0, 0, 1, 1], [], []>} : vector<17x12xf32>, vector<12x17xf32>, vector<17x17xf32> -> vector<17x17xf32>
    %c5_77 = arith.constant 5 : index
    %c0_78 = arith.constant 0 : index
    %c0_79 = arith.constant 0 : index
    %68 = vector.load %arg11[%c5_77, %c0_78, %c0_79] : memref<8x17x17xf32, #tpu.memory_space<vmem>>, vector<1x17x17xf32>
    %69 = vector.shape_cast %68 : vector<1x17x17xf32> to vector<17x17xf32>
    %70 = vector.shape_cast %67 : vector<17x17xf32> to vector<1x17x17xf32>
    tpu.vector_store %arg11[%c5_77, %c0_78, %c0_79], %70 {strides = array<i32>} : memref<8x17x17xf32, #tpu.memory_space<vmem>>, vector<1x17x17xf32>,
    %c6 = arith.constant 6 : index
    %c0_80 = arith.constant 0 : index
    %c0_81 = arith.constant 0 : index
    %71 = vector.load %arg6[%c6, %c0_80, %c0_81] : memref<8x12x12xf32, #tpu.memory_space<vmem>>, vector<1x12x12xf32>
    %72 = vector.shape_cast %71 : vector<1x12x12xf32> to vector<12x12xf32>
    %cst_82 = arith.constant dense<0.000000e+00> : vector<17x12xf32>
    %73 = tpu.matmul %27, %72, %cst_82 {dimension_numbers = #tpu.dot_dimension_numbers<[1], [0], [0], [1], [0, 0, 1, 1], [], []>} : vector<17x12xf32>, vector<12x12xf32>, vector<17x12xf32> -> vector<17x12xf32>
    %cst_83 = arith.constant dense<0.000000e+00> : vector<17x17xf32>
    %74 = tpu.matmul %73, %28, %cst_83 {dimension_numbers = #tpu.dot_dimension_numbers<[1], [0], [0], [1], [0, 0, 1, 1], [], []>} : vector<17x12xf32>, vector<12x17xf32>, vector<17x17xf32> -> vector<17x17xf32>
    %c6_84 = arith.constant 6 : index
    %c0_85 = arith.constant 0 : index
    %c0_86 = arith.constant 0 : index
    %75 = vector.load %arg11[%c6_84, %c0_85, %c0_86] : memref<8x17x17xf32, #tpu.memory_space<vmem>>, vector<1x17x17xf32>
    %76 = vector.shape_cast %75 : vector<1x17x17xf32> to vector<17x17xf32>
    %77 = vector.shape_cast %74 : vector<17x17xf32> to vector<1x17x17xf32>
    tpu.vector_store %arg11[%c6_84, %c0_85, %c0_86], %77 {strides = array<i32>} : memref<8x17x17xf32, #tpu.memory_space<vmem>>, vector<1x17x17xf32>,
    %c7 = arith.constant 7 : index
    %c0_87 = arith.constant 0 : index
    %c0_88 = arith.constant 0 : index
    %78 = vector.load %arg6[%c7, %c0_87, %c0_88] : memref<8x12x12xf32, #tpu.memory_space<vmem>>, vector<1x12x12xf32>
    %79 = vector.shape_cast %78 : vector<1x12x12xf32> to vector<12x12xf32>
    %cst_89 = arith.constant dense<0.000000e+00> : vector<17x12xf32>
    %80 = tpu.matmul %27, %79, %cst_89 {dimension_numbers = #tpu.dot_dimension_numbers<[1], [0], [0], [1], [0, 0, 1, 1], [], []>} : vector<17x12xf32>, vector<12x12xf32>, vector<17x12xf32> -> vector<17x12xf32>
    %cst_90 = arith.constant dense<0.000000e+00> : vector<17x17xf32>
    %81 = tpu.matmul %80, %28, %cst_90 {dimension_numbers = #tpu.dot_dimension_numbers<[1], [0], [0], [1], [0, 0, 1, 1], [], []>} : vector<17x12xf32>, vector<12x17xf32>, vector<17x17xf32> -> vector<17x17xf32>
    %c7_91 = arith.constant 7 : index
    %c0_92 = arith.constant 0 : index
    %c0_93 = arith.constant 0 : index
    %82 = vector.load %arg11[%c7_91, %c0_92, %c0_93] : memref<8x17x17xf32, #tpu.memory_space<vmem>>, vector<1x17x17xf32>
    %83 = vector.shape_cast %82 : vector<1x17x17xf32> to vector<17x17xf32>
    %84 = vector.shape_cast %81 : vector<17x17xf32> to vector<1x17x17xf32>
    tpu.vector_store %arg11[%c7_91, %c0_92, %c0_93], %84 {strides = array<i32>} : memref<8x17x17xf32, #tpu.memory_space<vmem>>, vector<1x17x17xf32>,
    return
  }
  func.func @transform_0(%arg0: i32) -> (i32, i32) {
    %c0_i32 = arith.constant 0 : i32
    %c0_i32_0 = arith.constant 0 : i32
    %c0_i32_1 = arith.constant 0 : i32
    return %c0_i32, %c0_i32_0 : i32, i32
  }
  func.func @transform_1(%arg0: i32) -> (i32, i32) {
    %c0_i32 = arith.constant 0 : i32
    %c0_i32_0 = arith.constant 0 : i32
    %c0_i32_1 = arith.constant 0 : i32
    return %c0_i32, %c0_i32_0 : i32, i32
  }
  func.func @transform_2(%arg0: i32) -> (i32, i32, i32) {
    %c0_i32 = arith.constant 0 : i32
    %c0_i32_0 = arith.constant 0 : i32
    %c0_i32_1 = arith.constant 0 : i32
    %c0_i32_2 = arith.constant 0 : i32
    return %c0_i32, %c0_i32_0, %c0_i32_1 : i32, i32, i32
  }
  func.func @transform_3(%arg0: i32) -> (i32, i32) {
    %c0_i32 = arith.constant 0 : i32
    %c0_i32_0 = arith.constant 0 : i32
    %c0_i32_1 = arith.constant 0 : i32
    return %c0_i32, %c0_i32_0 : i32, i32
  }
  func.func @transform_4(%arg0: i32) -> (i32, i32) {
    %c0_i32 = arith.constant 0 : i32
    %c0_i32_0 = arith.constant 0 : i32
    %c0_i32_1 = arith.constant 0 : i32
    return %c0_i32, %c0_i32_0 : i32, i32
  }
  func.func @transform_5(%arg0: i32) -> (i32, i32, i32) {
    %c0_i32 = arith.constant 0 : i32
    %c0_i32_0 = arith.constant 0 : i32
    %c0_i32_1 = arith.constant 0 : i32
    %c0_i32_2 = arith.constant 0 : i32
    return %c0_i32, %c0_i32_0, %c0_i32_1 : i32, i32, i32
  }
  func.func @transform_6(%arg0: i32) -> (i32, i32) {
    %c0_i32 = arith.constant 0 : i32
    %c0_i32_0 = arith.constant 0 : i32
    %c0_i32_1 = arith.constant 0 : i32
    return %c0_i32, %c0_i32_0 : i32, i32
  }
  func.func @transform_7(%arg0: i32) -> (i32, i32) {
    %c0_i32 = arith.constant 0 : i32
    %c0_i32_0 = arith.constant 0 : i32
    %c0_i32_1 = arith.constant 0 : i32
    return %c0_i32, %c0_i32_0 : i32, i32
  }
  func.func @transform_8(%arg0: i32) -> (i32, i32) {
    %c0_i32 = arith.constant 0 : i32
    %c0_i32_0 = arith.constant 0 : i32
    %c0_i32_1 = arith.constant 0 : i32
    return %c0_i32, %c0_i32_0 : i32, i32
  }
  func.func @transform_9(%arg0: i32) -> (i32, i32, i32) {
    %c0_i32 = arith.constant 0 : i32
    %c0_i32_0 = arith.constant 0 : i32
    %c0_i32_1 = arith.constant 0 : i32
    %c0_i32_2 = arith.constant 0 : i32
    return %c0_i32, %c0_i32_0, %c0_i32_1 : i32, i32, i32
  }
  func.func @transform_10(%arg0: i32) -> (i32, i32, i32) {
    %c0_i32 = arith.constant 0 : i32
    %c0_i32_0 = arith.constant 0 : i32
    %c0_i32_1 = arith.constant 0 : i32
    %c0_i32_2 = arith.constant 0 : i32
    return %c0_i32, %c0_i32_0, %c0_i32_1 : i32, i32, i32
  }
}

</mosaic_0001>

<llo_original>
// kernel: forward.1
$region0: #{forward.1}
  #allocation0 [shape = 'u32[]', space=smem, size = 0x4, offset = 0x4, fixed_abs, tag = 'smem constant byte address 0x4 - core index']
  #allocation1 [shape = 'u32[144,128]{1,0:T(1,128)}', space=vmem, size = 0x12000, scoped, tag = 'internal scratch']
  %s0 = inlined_call_operand.vmem [shape: f32[2,32], index: 0, kind: input, shape index: {}]
  %s1 = inlined_call_operand.vmem [shape: f32[32,72], index: 1, kind: input, shape index: {}]
  %s2 = inlined_call_operand.vmem [shape: f32[3,32,32], index: 2, kind: input, shape index: {}]
  %s3 = inlined_call_operand.vmem [shape: f32[32,32], index: 3, kind: input, shape index: {}]
  %s4 = inlined_call_operand.vmem [shape: f32[32,72], index: 4, kind: input, shape index: {}]
  %s5 = inlined_call_operand.vmem [shape: f32[8,12,12], index: 5, kind: input, shape index: {}]
  %s6 = inlined_call_operand.vmem [shape: f32[17,12], index: 6, kind: input, shape index: {}]
  %s7 = inlined_call_operand.vmem [shape: f32[12,17], index: 7, kind: input, shape index: {}]
  %s8 = inlined_call_operand.hbm [shape: f32[2,72], index: 8, kind: output, shape index: {0}]
  %s9 = inlined_call_operand.hbm [shape: f32[3,32,72], index: 9, kind: output, shape index: {1}]
  %s10 = inlined_call_operand.vmem [shape: f32[8,17,17], index: 10, kind: output, shape index: {2}]
  %11 = xla_tuple %s8, %s9, %s10
  %s12 = sld [smem:[#allocation0]]
  $region58: #{forward.1} parent=0
    _
  %s14 = ssub.s32 1, %s12
  %s15 = scalar_select 0, %s14, %s12
  $region1: #{forward.1} parent=0
    #allocation2 [shape = 'u8[1024]{0}', space=vmem, size = 0x400, scoped, tag = 'output window, operand 0, single buffered']
    #allocation3 [shape = 's32[1]{0}', space=sflag, size = 0x4, scoped, tag = 'scoped memory for forward.1']
    #allocation4 [shape = 'u8[49152]{0}', space=vmem, size = 0xc000, scoped, tag = 'output window, operand 1, single buffered']
    #allocation5 [shape = 's32[1]{0}', space=sflag, size = 0x4, scoped, tag = 'scoped memory for forward.1']
    %16 = vsyncpa [#allocation3], 0
    %17 = vsyncpa [#allocation5], 0
    // Predicated region
    $region2: #{forward.1} parent=1 // pred_check
      _
    $region3: #{forward.1} parent=1 // pred_check_branch
      %19 = sbr.rel (0) target = $region5
    $region4: #{forward.1} parent=1 // pred_region
      _
    $region5: #{forward.1} parent=1 // pred_fallthru
      _
    // Predicated region
    $region6: #{forward.1} parent=1 // pred_check
      _
    $region7: #{forward.1} parent=1 // pred_check_branch
      %21 = sbr.rel (0) target = $region9
    $region8: #{forward.1} parent=1 // pred_region
      _
    $region9: #{forward.1} parent=1 // pred_fallthru
      _
    // Predicated region
    $region10: #{forward.1} parent=1 // pred_check
      _
    $region11: #{forward.1} parent=1 // pred_check_branch
      %23 = sbr.rel (0) target = $region13
    $region12: #{forward.1} parent=1 // pred_region
      _
    $region13: #{forward.1} parent=1 // pred_fallthru
      _
    // Predicated region
    $region14: #{forward.1} parent=1 // pred_check
      _
    $region15: #{forward.1} parent=1 // pred_check_branch
      %25 = sbr.rel (0) target = $region17
    $region16: #{forward.1} parent=1 // pred_region
      _
    $region17: #{forward.1} parent=1 // pred_fallthru
      _
    // Predicated region
    $region18: #{forward.1} parent=1 // pred_check
      _
    $region19: #{forward.1} parent=1 // pred_check_branch
      %27 = sbr.rel (0) target = $region21
    $region20: #{forward.1} parent=1 // pred_region
      _
    $region21: #{forward.1} parent=1 // pred_fallthru
      _
    // Predicated region
    $region22: #{forward.1} parent=1 // pred_check
      _
    $region23: #{forward.1} parent=1 // pred_check_branch
      %29 = sbr.rel (0) target = $region25
    $region24: #{forward.1} parent=1 // pred_region
      _
    $region25: #{forward.1} parent=1 // pred_fallthru
      _
    // Predicated region
    $region26: #{forward.1} parent=1 // pred_check
      _
    $region27: #{forward.1} parent=1 // pred_check_branch
      %31 = sbr.rel (0) target = $region29
    $region28: #{forward.1} parent=1 // pred_region
      _
    $region29: #{forward.1} parent=1 // pred_fallthru
      _
    // Predicated region
    $region30: #{forward.1} parent=1 // pred_check
      _
    $region31: #{forward.1} parent=1 // pred_check_branch
      %33 = sbr.rel (0) target = $region33
    $region32: #{forward.1} parent=1 // pred_region
      _
    $region33: #{forward.1} parent=1 // pred_fallthru
      _
    %v34 = vld [vmem:[%s0] sm:$0x3]
    %v35 = vld [vmem:[%s1] sm:$0xff]
    %v36 = vld [vmem:[%s1 + $0x8] sm:$0xff]
    %v37 = vld [vmem:[%s1 + $0x10] sm:$0xff]
    %v38 = vld [vmem:[%s1 + $0x18] sm:$0xff]
    %vm39 = vcmask 261120
    %v41 = vsel %vm39, %v34, 0
    %43 = vmatprep.subr.mxu0 0.0
    %44 = vmatpush1.msra.mxu0 %v35
    %45 = vmatprep.subr.mxu0 0.0
    %46 = vmatpush1.msra.mxu0 %v36
    %47 = vmatprep.subr.mxu0 0.0
    %48 = vmatpush1.msra.mxu0 %v37
    %49 = vmatprep.subr.mxu0 0.0
    %50 = vmatpush1.msra.mxu0 %v38
    %51 = vmatprep.subr.mxu0 0.0
    %52 = vmatpush1.msra.mxu0 0.0
    %53 = vmatprep.subr.mxu0 0.0
    %54 = vmatpush1.msra.mxu0 0.0
    %55 = vmatprep.subr.mxu0 0.0
    %56 = vmatpush1.msra.mxu0 0.0
    %57 = vmatprep.subr.mxu0 0.0
    %58 = vmatpush1.msra.mxu0 0.0
    %59 = vmatprep.subr.mxu0 0.0
    %60 = vmatpush1.msra.mxu0 0.0
    %61 = vmatprep.subr.mxu0 0.0
    %62 = vmatpush1.msra.mxu0 0.0
    %63 = vmatprep.subr.mxu0 0.0
    %64 = vmatpush1.msra.mxu0 0.0
    %65 = vmatprep.subr.mxu0 0.0
    %66 = vmatpush1.msra.mxu0 0.0
    %67 = vmatprep.subr.mxu0 0.0
    %68 = vmatpush1.msra.mxu0 0.0
    %69 = vmatprep.subr.mxu0 0.0
    %70 = vmatpush1.msra.mxu0 0.0
    %71 = vmatprep.subr.mxu0 0.0
    %72 = vmatpush1.msra.mxu0 0.0
    %73 = vmatprep.subr.mxu0 0.0
    %74 = vmatpush1.msra.mxu0 0.0
    %75 = vmatprep.subr.mxu0 0.0
    %76 = vmatpush1.msra.mxu0 0.0
    %77 = vmatprep.subr.mxu0 0.0
    %78 = vmatpush1.msra.mxu0 0.0
    %79 = vmatprep.subr.mxu0 0.0
    %80 = vmatpush1.msra.mxu0 0.0
    %81 = vmatprep.subr.mxu0 0.0
    %82 = vmatpush1.msra.mxu0 0.0
    %83 = vmatprep.subr.mxu0 0.0
    %84 = vmatpush1.msra.mxu0 0.0
    %85 = vmatprep.subr.mxu0 0.0
    %86 = vmatpush1.msra.mxu0 0.0
    %87 = vmatprep.subr.mxu0 0.0
    %88 = vmatpush1.msra.mxu0 0.0
    %89 = vmatprep.subr.mxu0 0.0
    %90 = vmatpush1.msra.mxu0 0.0
    %91 = vmatprep.subr.mxu0 0.0
    %92 = vmatpush1.msra.mxu0 0.0
    %93 = vmatprep.subr.mxu0 0.0
    %94 = vmatpush1.msra.mxu0 0.0
    %95 = vmatprep.subr.mxu0 0.0
    %96 = vmatpush1.msra.mxu0 0.0
    %97 = vmatprep.subr.mxu0 0.0
    %98 = vmatpush1.msra.mxu0 0.0
    %99 = vmatprep.subr.mxu0 0.0
    %100 = vmatpush1.msra.mxu0 0.0
    %101 = vmatprep.subr.mxu0 0.0
    %102 = vmatpush1.msra.mxu0 0.0
    %103 = vmatprep.subr.mxu0 0.0
    %104 = vmatpush1.msra.mxu0 0.0
    %105 = vmatprep.subr.mxu0 0.0
    %106 = vmatpush1.msra.mxu0 0.0
    %107 = vmatprep.mubr.f32.mxu0 0.0
    %108 = vmatmul.mubr.f32.gmra.mrb[0].mxu0 %v41
    %v109 = vpop.f32.mrb[0].mxu0
    %v110 = vadd.f32 0.0, %v109
    %v111 = vpop.f32.mrb[0].mxu0
    %112 = vdwg.mxu0
    %vm113 = vcmask 582656
    %114 = vst.msk [vmem:[#allocation2] sm:$0x3] %vm113, %v110
    %v115 = vld [vmem:[%s3] sm:$0xff]
    %v116 = vld [vmem:[%s3 + $0x8] sm:$0xff]
    %v117 = vld [vmem:[%s3 + $0x10] sm:$0xff]
    %v118 = vld [vmem:[%s3 + $0x18] sm:$0xff]
    %v119 = vld [vmem:[%s4] sm:$0xff]
    %v120 = vld [vmem:[%s4 + $0x8] sm:$0xff]
    %v121 = vld [vmem:[%s4 + $0x10] sm:$0xff]
    %v122 = vld [vmem:[%s4 + $0x18] sm:$0xff]
    %v123 = vld [vmem:[%s2] sm:$0xff]
    %v124 = vld [vmem:[%s2 + $0x8] sm:$0xff]
    %v125 = vld [vmem:[%s2 + $0x10] sm:$0xff]
    %v126 = vld [vmem:[%s2 + $0x18] sm:$0xff]
    %v128 = vsel %vm39, %v115, 0
    %v131 = vsel %vm39, %v116, 0
    %v134 = vsel %vm39, %v117, 0
    %v137 = vsel %vm39, %v118, 0
    %139 = vmatprep.subr.mxu0 0.0
    %140 = vmatpush1.msra.mxu0 %v123
    %141 = vmatprep.subr.mxu0 0.0
    %142 = vmatpush1.msra.mxu0 %v124
    %143 = vmatprep.subr.mxu0 0.0
    %144 = vmatpush1.msra.mxu0 %v125
    %145 = vmatprep.subr.mxu0 0.0
    %146 = vmatpush1.msra.mxu0 %v126
    %147 = vmatprep.subr.mxu0 0.0
    %148 = vmatpush1.msra.mxu0 0.0
    %149 = vmatprep.subr.mxu0 0.0
    %150 = vmatpush1.msra.mxu0 0.0
    %151 = vmatprep.subr.mxu0 0.0
    %152 = vmatpush1.msra.mxu0 0.0
    %153 = vmatprep.subr.mxu0 0.0
    %154 = vmatpush1.msra.mxu0 0.0
    %155 = vmatprep.subr.mxu0 0.0
    %156 = vmatpush1.msra.mxu0 0.0
    %157 = vmatprep.subr.mxu0 0.0
    %158 = vmatpush1.msra.mxu0 0.0
    %159 = vmatprep.subr.mxu0 0.0
    %160 = vmatpush1.msra.mxu0 0.0
    %161 = vmatprep.subr.mxu0 0.0
    %162 = vmatpush1.msra.mxu0 0.0
    %163 = vmatprep.subr.mxu0 0.0
    %164 = vmatpush1.msra.mxu0 0.0
    %165 = vmatprep.subr.mxu0 0.0
    %166 = vmatpush1.msra.mxu0 0.0
    %167 = vmatprep.subr.mxu0 0.0
    %168 = vmatpush1.msra.mxu0 0.0
    %169 = vmatprep.subr.mxu0 0.0
    %170 = vmatpush1.msra.mxu0 0.0
    %171 = vmatprep.subr.mxu0 0.0
    %172 = vmatpush1.msra.mxu0 0.0
    %173 = vmatprep.subr.mxu0 0.0
    %174 = vmatpush1.msra.mxu0 0.0
    %175 = vmatprep.subr.mxu0 0.0
    %176 = vmatpush1.msra.mxu0 0.0
    %177 = vmatprep.subr.mxu0 0.0
    %178 = vmatpush1.msra.mxu0 0.0
    %179 = vmatprep.subr.mxu0 0.0
    %180 = vmatpush1.msra.mxu0 0.0
    %181 = vmatprep.subr.mxu0 0.0
    %182 = vmatpush1.msra.mxu0 0.0
    %183 = vmatprep.subr.mxu0 0.0
    %184 = vmatpush1.msra.mxu0 0.0
    %185 = vmatprep.subr.mxu0 0.0
    %186 = vmatpush1.msra.mxu0 0.0
    %187 = vmatprep.subr.mxu0 0.0
    %188 = vmatpush1.msra.mxu0 0.0
    %189 = vmatprep.subr.mxu0 0.0
    %190 = vmatpush1.msra.mxu0 0.0
    %191 = vmatprep.subr.mxu0 0.0
    %192 = vmatpush1.msra.mxu0 0.0
    %193 = vmatprep.subr.mxu0 0.0
    %194 = vmatpush1.msra.mxu0 0.0
    %195 = vmatprep.subr.mxu0 0.0
    %196 = vmatpush1.msra.mxu0 0.0
    %197 = vmatprep.subr.mxu0 0.0
    %198 = vmatpush1.msra.mxu0 0.0
    %199 = vmatprep.subr.mxu0 0.0
    %200 = vmatpush1.msra.mxu0 0.0
    %201 = vmatprep.subr.mxu0 0.0
    %202 = vmatpush1.msra.mxu0 0.0
    %203 = vmatprep.mubr.f32.mxu0 0.0
    %204 = vmatmul.mubr.f32.gmra.mrb[0].mxu0 %v128
    %v205 = vpop.f32.mrb[0].mxu0
    %v206 = vadd.f32 0.0, %v205
    %v207 = vpop.f32.mrb[0].mxu0
    %208 = vmatprep.mubr.f32.mxu0 0.0
    %209 = vmatmul.mubr.f32.gmra.mrb[0].mxu0 %v131
    %v210 = vpop.f32.mrb[0].mxu0
    %v211 = vadd.f32 0.0, %v210
    %v212 = vpop.f32.mrb[0].mxu0
    %213 = vmatprep.mubr.f32.mxu0 0.0
    %214 = vmatmul.mubr.f32.gmra.mrb[0].mxu0 %v134
    %v215 = vpop.f32.mrb[0].mxu0
    %v216 = vadd.f32 0.0, %v215
    %v217 = vpop.f32.mrb[0].mxu0
    %218 = vmatprep.mubr.f32.mxu0 0.0
    %219 = vmatmul.mubr.f32.gmra.mrb[0].mxu0 %v137
    %v220 = vpop.f32.mrb[0].mxu0
    %v221 = vadd.f32 0.0, %v220
    %v222 = vpop.f32.mrb[0].mxu0
    %223 = vdwg.mxu0
    %v225 = vsel %vm39, %v206, 0
    %v228 = vsel %vm39, %v211, 0
    %v231 = vsel %vm39, %v216, 0
    %v234 = vsel %vm39, %v221, 0
    %236 = vmatprep.subr.mxu0 0.0
    %237 = vmatpush1.msra.mxu0 %v119
    %238 = vmatprep.subr.mxu0 0.0
    %239 = vmatpush1.msra.mxu0 %v120
    %240 = vmatprep.subr.mxu0 0.0
    %241 = vmatpush1.msra.mxu0 %v121
    %242 = vmatprep.subr.mxu0 0.0
    %243 = vmatpush1.msra.mxu0 %v122
    %244 = vmatprep.subr.mxu0 0.0
    %245 = vmatpush1.msra.mxu0 0.0
    %246 = vmatprep.subr.mxu0 0.0
    %247 = vmatpush1.msra.mxu0 0.0
    %248 = vmatprep.subr.mxu0 0.0
    %249 = vmatpush1.msra.mxu0 0.0
    %250 = vmatprep.subr.mxu0 0.0
    %251 = vmatpush1.msra.mxu0 0.0
    %252 = vmatprep.subr.mxu0 0.0
    %253 = vmatpush1.msra.mxu0 0.0
    %254 = vmatprep.subr.mxu0 0.0
    %255 = vmatpush1.msra.mxu0 0.0
    %256 = vmatprep.subr.mxu0 0.0
    %257 = vmatpush1.msra.mxu0 0.0
    %258 = vmatprep.subr.mxu0 0.0
    %259 = vmatpush1.msra.mxu0 0.0
    %260 = vmatprep.subr.mxu0 0.0
    %261 = vmatpush1.msra.mxu0 0.0
    %262 = vmatprep.subr.mxu0 0.0
    %263 = vmatpush1.msra.mxu0 0.0
    %264 = vmatprep.subr.mxu0 0.0
    %265 = vmatpush1.msra.mxu0 0.0
    %266 = vmatprep.subr.mxu0 0.0
    %267 = vmatpush1.msra.mxu0 0.0
    %268 = vmatprep.subr.mxu0 0.0
    %269 = vmatpush1.msra.mxu0 0.0
    %270 = vmatprep.subr.mxu0 0.0
    %271 = vmatpush1.msra.mxu0 0.0
    %272 = vmatprep.subr.mxu0 0.0
    %273 = vmatpush1.msra.mxu0 0.0
    %274 = vmatprep.subr.mxu0 0.0
    %275 = vmatpush1.msra.mxu0 0.0
    %276 = vmatprep.subr.mxu0 0.0
    %277 = vmatpush1.msra.mxu0 0.0
    %278 = vmatprep.subr.mxu0 0.0
    %279 = vmatpush1.msra.mxu0 0.0
    %280 = vmatprep.subr.mxu0 0.0
    %281 = vmatpush1.msra.mxu0 0.0
    %282 = vmatprep.subr.mxu0 0.0
    %283 = vmatpush1.msra.mxu0 0.0
    %284 = vmatprep.subr.mxu0 0.0
    %285 = vmatpush1.msra.mxu0 0.0
    %286 = vmatprep.subr.mxu0 0.0
    %287 = vmatpush1.msra.mxu0 0.0
    %288 = vmatprep.subr.mxu0 0.0
    %289 = vmatpush1.msra.mxu0 0.0
    %290 = vmatprep.subr.mxu0 0.0
    %291 = vmatpush1.msra.mxu0 0.0
    %292 = vmatprep.subr.mxu0 0.0
    %293 = vmatpush1.msra.mxu0 0.0
    %294 = vmatprep.subr.mxu0 0.0
    %295 = vmatpush1.msra.mxu0 0.0
    %296 = vmatprep.subr.mxu0 0.0
    %297 = vmatpush1.msra.mxu0 0.0
    %298 = vmatprep.subr.mxu0 0.0
    %299 = vmatpush1.msra.mxu0 0.0
    %300 = vmatprep.mubr.f32.mxu0 0.0
    %301 = vmatmul.mubr.f32.gmra.mrb[0].mxu0 %v225
    %v302 = vpop.f32.mrb[0].mxu0
    %v303 = vadd.f32 0.0, %v302
    %v304 = vpop.f32.mrb[0].mxu0
    %305 = vmatprep.mubr.f32.mxu0 0.0
    %306 = vmatmul.mubr.f32.gmra.mrb[0].mxu0 %v228
    %v307 = vpop.f32.mrb[0].mxu0
    %v308 = vadd.f32 0.0, %v307
    %v309 = vpop.f32.mrb[0].mxu0
    %310 = vmatprep.mubr.f32.mxu0 0.0
    %311 = vmatmul.mubr.f32.gmra.mrb[0].mxu0 %v231
    %v312 = vpop.f32.mrb[0].mxu0
    %v313 = vadd.f32 0.0, %v312
    %v314 = vpop.f32.mrb[0].mxu0
    %315 = vmatprep.mubr.f32.mxu0 0.0
    %316 = vmatmul.mubr.f32.gmra.mrb[0].mxu0 %v234
    %v317 = vpop.f32.mrb[0].mxu0
    %v318 = vadd.f32 0.0, %v317
    %v319 = vpop.f32.mrb[0].mxu0
    %320 = vdwg.mxu0
    %vm321 = vcmask 588800
    %322 = vst.msk [vmem:[#allocation4] sm:$0xff] %vm321, %v303
    %323 = vst.msk [vmem:[#allocation4 + $0x8] sm:$0xff] %vm321, %v308
    %324 = vst.msk [vmem:[#allocation4 + $0x10] sm:$0xff] %vm321, %v313
    %325 = vst.msk [vmem:[#allocation4 + $0x18] sm:$0xff] %vm321, %v318
    %s326 = scalar_lea.vmem %s2, 32
    %v327 = vld [vmem:[%s326] sm:$0xff]
    %v328 = vld [vmem:[%s326 + $0x8] sm:$0xff]
    %v329 = vld [vmem:[%s326 + $0x10] sm:$0xff]
    %v330 = vld [vmem:[%s326 + $0x18] sm:$0xff]
    %331 = vmatprep.subr.mxu0 0.0
    %332 = vmatpush1.msra.mxu0 %v327
    %333 = vmatprep.subr.mxu0 0.0
    %334 = vmatpush1.msra.mxu0 %v328
    %335 = vmatprep.subr.mxu0 0.0
    %336 = vmatpush1.msra.mxu0 %v329
    %337 = vmatprep.subr.mxu0 0.0
    %338 = vmatpush1.msra.mxu0 %v330
    %339 = vmatprep.subr.mxu0 0.0
    %340 = vmatpush1.msra.mxu0 0.0
    %341 = vmatprep.subr.mxu0 0.0
    %342 = vmatpush1.msra.mxu0 0.0
    %343 = vmatprep.subr.mxu0 0.0
    %344 = vmatpush1.msra.mxu0 0.0
    %345 = vmatprep.subr.mxu0 0.0
    %346 = vmatpush1.msra.mxu0 0.0
    %347 = vmatprep.subr.mxu0 0.0
    %348 = vmatpush1.msra.mxu0 0.0
    %349 = vmatprep.subr.mxu0 0.0
    %350 = vmatpush1.msra.mxu0 0.0
    %351 = vmatprep.subr.mxu0 0.0
    %352 = vmatpush1.msra.mxu0 0.0
    %353 = vmatprep.subr.mxu0 0.0
    %354 = vmatpush1.msra.mxu0 0.0
    %355 = vmatprep.subr.mxu0 0.0
    %356 = vmatpush1.msra.mxu0 0.0
    %357 = vmatprep.subr.mxu0 0.0
    %358 = vmatpush1.msra.mxu0 0.0
    %359 = vmatprep.subr.mxu0 0.0
    %360 = vmatpush1.msra.mxu0 0.0
    %361 = vmatprep.subr.mxu0 0.0
    %362 = vmatpush1.msra.mxu0 0.0
    %363 = vmatprep.subr.mxu0 0.0
    %364 = vmatpush1.msra.mxu0 0.0
    %365 = vmatprep.subr.mxu0 0.0
    %366 = vmatpush1.msra.mxu0 0.0
    %367 = vmatprep.subr.mxu0 0.0
    %368 = vmatpush1.msra.mxu0 0.0
    %369 = vmatprep.subr.mxu0 0.0
    %370 = vmatpush1.msra.mxu0 0.0
    %371 = vmatprep.subr.mxu0 0.0
    %372 = vmatpush1.msra.mxu0 0.0
    %373 = vmatprep.subr.mxu0 0.0
    %374 = vmatpush1.msra.mxu0 0.0
    %375 = vmatprep.subr.mxu0 0.0
    %376 = vmatpush1.msra.mxu0 0.0
    %377 = vmatprep.subr.mxu0 0.0
    %378 = vmatpush1.msra.mxu0 0.0
    %379 = vmatprep.subr.mxu0 0.0
    %380 = vmatpush1.msra.mxu0 0.0
    %381 = vmatprep.subr.mxu0 0.0
    %382 = vmatpush1.msra.mxu0 0.0
    %383 = vmatprep.subr.mxu0 0.0
    %384 = vmatpush1.msra.mxu0 0.0
    %385 = vmatprep.subr.mxu0 0.0
    %386 = vmatpush1.msra.mxu0 0.0
    %387 = vmatprep.subr.mxu0 0.0
    %388 = vmatpush1.msra.mxu0 0.0
    %389 = vmatprep.subr.mxu0 0.0
    %390 = vmatpush1.msra.mxu0 0.0
    %391 = vmatprep.subr.mxu0 0.0
    %392 = vmatpush1.msra.mxu0 0.0
    %393 = vmatprep.subr.mxu0 0.0
    %394 = vmatpush1.msra.mxu0 0.0
    %395 = vmatprep.mubr.f32.mxu0 0.0
    %396 = vmatmul.mubr.f32.gmra.mrb[0].mxu0 %v128
    %v397 = vpop.f32.mrb[0].mxu0
    %v398 = vadd.f32 0.0, %v397
    %v399 = vpop.f32.mrb[0].mxu0
    %400 = vmatprep.mubr.f32.mxu0 0.0
    %401 = vmatmul.mubr.f32.gmra.mrb[0].mxu0 %v131
    %v402 = vpop.f32.mrb[0].mxu0
    %v403 = vadd.f32 0.0, %v402
    %v404 = vpop.f32.mrb[0].mxu0
    %405 = vmatprep.mubr.f32.mxu0 0.0
    %406 = vmatmul.mubr.f32.gmra.mrb[0].mxu0 %v134
    %v407 = vpop.f32.mrb[0].mxu0
    %v408 = vadd.f32 0.0, %v407
    %v409 = vpop.f32.mrb[0].mxu0
    %410 = vmatprep.mubr.f32.mxu0 0.0
    %411 = vmatmul.mubr.f32.gmra.mrb[0].mxu0 %v137
    %v412 = vpop.f32.mrb[0].mxu0
    %v413 = vadd.f32 0.0, %v412
    %v414 = vpop.f32.mrb[0].mxu0
    %415 = vdwg.mxu0
    %v417 = vsel %vm39, %v398, 0
    %v420 = vsel %vm39, %v403, 0
    %v423 = vsel %vm39, %v408, 0
    %v426 = vsel %vm39, %v413, 0
    %428 = vmatprep.subr.mxu0 0.0
    %429 = vmatpush1.msra.mxu0 %v119
    %430 = vmatprep.subr.mxu0 0.0
    %431 = vmatpush1.msra.mxu0 %v120
    %432 = vmatprep.subr.mxu0 0.0
    %433 = vmatpush1.msra.mxu0 %v121
    %434 = vmatprep.subr.mxu0 0.0
    %435 = vmatpush1.msra.mxu0 %v122
    %436 = vmatprep.subr.mxu0 0.0
    %437 = vmatpush1.msra.mxu0 0.0
    %438 = vmatprep.subr.mxu0 0.0
    %439 = vmatpush1.msra.mxu0 0.0
    %440 = vmatprep.subr.mxu0 0.0
    %441 = vmatpush1.msra.mxu0 0.0
    %442 = vmatprep.subr.mxu0 0.0
    %443 = vmatpush1.msra.mxu0 0.0
    %444 = vmatprep.subr.mxu0 0.0
    %445 = vmatpush1.msra.mxu0 0.0
    %446 = vmatprep.subr.mxu0 0.0
    %447 = vmatpush1.msra.mxu0 0.0
    %448 = vmatprep.subr.mxu0 0.0
    %449 = vmatpush1.msra.mxu0 0.0
    %450 = vmatprep.subr.mxu0 0.0
    %451 = vmatpush1.msra.mxu0 0.0
    %452 = vmatprep.subr.mxu0 0.0
    %453 = vmatpush1.msra.mxu0 0.0
    %454 = vmatprep.subr.mxu0 0.0
    %455 = vmatpush1.msra.mxu0 0.0
    %456 = vmatprep.subr.mxu0 0.0
    %457 = vmatpush1.msra.mxu0 0.0
    %458 = vmatprep.subr.mxu0 0.0
    %459 = vmatpush1.msra.mxu0 0.0
    %460 = vmatprep.subr.mxu0 0.0
    %461 = vmatpush1.msra.mxu0 0.0
    %462 = vmatprep.subr.mxu0 0.0
    %463 = vmatpush1.msra.mxu0 0.0
    %464 = vmatprep.subr.mxu0 0.0
    %465 = vmatpush1.msra.mxu0 0.0
    %466 = vmatprep.subr.mxu0 0.0
    %467 = vmatpush1.msra.mxu0 0.0
    %468 = vmatprep.subr.mxu0 0.0
    %469 = vmatpush1.msra.mxu0 0.0
    %470 = vmatprep.subr.mxu0 0.0
    %471 = vmatpush1.msra.mxu0 0.0
    %472 = vmatprep.subr.mxu0 0.0
    %473 = vmatpush1.msra.mxu0 0.0
    %474 = vmatprep.subr.mxu0 0.0
    %475 = vmatpush1.msra.mxu0 0.0
    %476 = vmatprep.subr.mxu0 0.0
    %477 = vmatpush1.msra.mxu0 0.0
    %478 = vmatprep.subr.mxu0 0.0
    %479 = vmatpush1.msra.mxu0 0.0
    %480 = vmatprep.subr.mxu0 0.0
    %481 = vmatpush1.msra.mxu0 0.0
    %482 = vmatprep.subr.mxu0 0.0
    %483 = vmatpush1.msra.mxu0 0.0
    %484 = vmatprep.subr.mxu0 0.0
    %485 = vmatpush1.msra.mxu0 0.0
    %486 = vmatprep.subr.mxu0 0.0
    %487 = vmatpush1.msra.mxu0 0.0
    %488 = vmatprep.subr.mxu0 0.0
    %489 = vmatpush1.msra.mxu0 0.0
    %490 = vmatprep.subr.mxu0 0.0
    %491 = vmatpush1.msra.mxu0 0.0
    %492 = vmatprep.mubr.f32.mxu0 0.0
    %493 = vmatmul.mubr.f32.gmra.mrb[0].mxu0 %v417
    %v494 = vpop.f32.mrb[0].mxu0
    %v495 = vadd.f32 0.0, %v494
    %v496 = vpop.f32.mrb[0].mxu0
    %497 = vmatprep.mubr.f32.mxu0 0.0
    %498 = vmatmul.mubr.f32.gmra.mrb[0].mxu0 %v420
    %v499 = vpop.f32.mrb[0].mxu0
    %v500 = vadd.f32 0.0, %v499
    %v501 = vpop.f32.mrb[0].mxu0
    %502 = vmatprep.mubr.f32.mxu0 0.0
    %503 = vmatmul.mubr.f32.gmra.mrb[0].mxu0 %v423
    %v504 = vpop.f32.mrb[0].mxu0
    %v505 = vadd.f32 0.0, %v504
    %v506 = vpop.f32.mrb[0].mxu0
    %507 = vmatprep.mubr.f32.mxu0 0.0
    %508 = vmatmul.mubr.f32.gmra.mrb[0].mxu0 %v426
    %v509 = vpop.f32.mrb[0].mxu0
    %v510 = vadd.f32 0.0, %v509
    %v511 = vpop.f32.mrb[0].mxu0
    %512 = vdwg.mxu0
    %s513 = scalar_lea.vmem [#allocation4], 32
    %514 = vst.msk [vmem:[%s513] sm:$0xff] %vm321, %v495
    %515 = vst.msk [vmem:[%s513 + $0x8] sm:$0xff] %vm321, %v500
    %516 = vst.msk [vmem:[%s513 + $0x10] sm:$0xff] %vm321, %v505
    %517 = vst.msk [vmem:[%s513 + $0x18] sm:$0xff] %vm321, %v510
    %s518 = scalar_lea.vmem %s2, 64
    %v519 = vld [vmem:[%s518] sm:$0xff]
    %v520 = vld [vmem:[%s518 + $0x8] sm:$0xff]
    %v521 = vld [vmem:[%s518 + $0x10] sm:$0xff]
    %v522 = vld [vmem:[%s518 + $0x18] sm:$0xff]
    %523 = vmatprep.subr.mxu0 0.0
    %524 = vmatpush1.msra.mxu0 %v519
    %525 = vmatprep.subr.mxu0 0.0
    %526 = vmatpush1.msra.mxu0 %v520
    %527 = vmatprep.subr.mxu0 0.0
    %528 = vmatpush1.msra.mxu0 %v521
    %529 = vmatprep.subr.mxu0 0.0
    %530 = vmatpush1.msra.mxu0 %v522
    %531 = vmatprep.subr.mxu0 0.0
    %532 = vmatpush1.msra.mxu0 0.0
    %533 = vmatprep.subr.mxu0 0.0
    %534 = vmatpush1.msra.mxu0 0.0
    %535 = vmatprep.subr.mxu0 0.0
    %536 = vmatpush1.msra.mxu0 0.0
    %537 = vmatprep.subr.mxu0 0.0
    %538 = vmatpush1.msra.mxu0 0.0
    %539 = vmatprep.subr.mxu0 0.0
    %540 = vmatpush1.msra.mxu0 0.0
    %541 = vmatprep.subr.mxu0 0.0
    %542 = vmatpush1.msra.mxu0 0.0
    %543 = vmatprep.subr.mxu0 0.0
    %544 = vmatpush1.msra.mxu0 0.0
    %545 = vmatprep.subr.mxu0 0.0
    %546 = vmatpush1.msra.mxu0 0.0
    %547 = vmatprep.subr.mxu0 0.0
    %548 = vmatpush1.msra.mxu0 0.0
    %549 = vmatprep.subr.mxu0 0.0
    %550 = vmatpush1.msra.mxu0 0.0
    %551 = vmatprep.subr.mxu0 0.0
    %552 = vmatpush1.msra.mxu0 0.0
    %553 = vmatprep.subr.mxu0 0.0
    %554 = vmatpush1.msra.mxu0 0.0
    %555 = vmatprep.subr.mxu0 0.0
    %556 = vmatpush1.msra.mxu0 0.0
    %557 = vmatprep.subr.mxu0 0.0
    %558 = vmatpush1.msra.mxu0 0.0
    %559 = vmatprep.subr.mxu0 0.0
    %560 = vmatpush1.msra.mxu0 0.0
    %561 = vmatprep.subr.mxu0 0.0
    %562 = vmatpush1.msra.mxu0 0.0
    %563 = vmatprep.subr.mxu0 0.0
    %564 = vmatpush1.msra.mxu0 0.0
    %565 = vmatprep.subr.mxu0 0.0
    %566 = vmatpush1.msra.mxu0 0.0
    %567 = vmatprep.subr.mxu0 0.0
    %568 = vmatpush1.msra.mxu0 0.0
    %569 = vmatprep.subr.mxu0 0.0
    %570 = vmatpush1.msra.mxu0 0.0
    %571 = vmatprep.subr.mxu0 0.0
    %572 = vmatpush1.msra.mxu0 0.0
    %573 = vmatprep.subr.mxu0 0.0
    %574 = vmatpush1.msra.mxu0 0.0
    %575 = vmatprep.subr.mxu0 0.0
    %576 = vmatpush1.msra.mxu0 0.0
    %577 = vmatprep.subr.mxu0 0.0
    %578 = vmatpush1.msra.mxu0 0.0
    %579 = vmatprep.subr.mxu0 0.0
    %580 = vmatpush1.msra.mxu0 0.0
    %581 = vmatprep.subr.mxu0 0.0
    %582 = vmatpush1.msra.mxu0 0.0
    %583 = vmatprep.subr.mxu0 0.0
    %584 = vmatpush1.msra.mxu0 0.0
    %585 = vmatprep.subr.mxu0 0.0
    %586 = vmatpush1.msra.mxu0 0.0
    %587 = vmatprep.mubr.f32.mxu0 0.0
    %588 = vmatmul.mubr.f32.gmra.mrb[0].mxu0 %v128
    %v589 = vpop.f32.mrb[0].mxu0
    %v590 = vadd.f32 0.0, %v589
    %v591 = vpop.f32.mrb[0].mxu0
    %592 = vmatprep.mubr.f32.mxu0 0.0
    %593 = vmatmul.mubr.f32.gmra.mrb[0].mxu0 %v131
    %v594 = vpop.f32.mrb[0].mxu0
    %v595 = vadd.f32 0.0, %v594
    %v596 = vpop.f32.mrb[0].mxu0
    %597 = vmatprep.mubr.f32.mxu0 0.0
    %598 = vmatmul.mubr.f32.gmra.mrb[0].mxu0 %v134
    %v599 = vpop.f32.mrb[0].mxu0
    %v600 = vadd.f32 0.0, %v599
    %v601 = vpop.f32.mrb[0].mxu0
    %602 = vmatprep.mubr.f32.mxu0 0.0
    %603 = vmatmul.mubr.f32.gmra.mrb[0].mxu0 %v137
    %v604 = vpop.f32.mrb[0].mxu0
    %v605 = vadd.f32 0.0, %v604
    %v606 = vpop.f32.mrb[0].mxu0
    %607 = vdwg.mxu0
    %v609 = vsel %vm39, %v590, 0
    %v612 = vsel %vm39, %v595, 0
    %v615 = vsel %vm39, %v600, 0
    %v618 = vsel %vm39, %v605, 0
    %620 = vmatprep.subr.mxu0 0.0
    %621 = vmatpush1.msra.mxu0 %v119
    %622 = vmatprep.subr.mxu0 0.0
    %623 = vmatpush1.msra.mxu0 %v120
    %624 = vmatprep.subr.mxu0 0.0
    %625 = vmatpush1.msra.mxu0 %v121
    %626 = vmatprep.subr.mxu0 0.0
    %627 = vmatpush1.msra.mxu0 %v122
    %628 = vmatprep.subr.mxu0 0.0
    %629 = vmatpush1.msra.mxu0 0.0
    %630 = vmatprep.subr.mxu0 0.0
    %631 = vmatpush1.msra.mxu0 0.0
    %632 = vmatprep.subr.mxu0 0.0
    %633 = vmatpush1.msra.mxu0 0.0
    %634 = vmatprep.subr.mxu0 0.0
    %635 = vmatpush1.msra.mxu0 0.0
    %636 = vmatprep.subr.mxu0 0.0
    %637 = vmatpush1.msra.mxu0 0.0
    %638 = vmatprep.subr.mxu0 0.0
    %639 = vmatpush1.msra.mxu0 0.0
    %640 = vmatprep.subr.mxu0 0.0
    %641 = vmatpush1.msra.mxu0 0.0
    %642 = vmatprep.subr.mxu0 0.0
    %643 = vmatpush1.msra.mxu0 0.0
    %644 = vmatprep.subr.mxu0 0.0
    %645 = vmatpush1.msra.mxu0 0.0
    %646 = vmatprep.subr.mxu0 0.0
    %647 = vmatpush1.msra.mxu0 0.0
    %648 = vmatprep.subr.mxu0 0.0
    %649 = vmatpush1.msra.mxu0 0.0
    %650 = vmatprep.subr.mxu0 0.0
    %651 = vmatpush1.msra.mxu0 0.0
    %652 = vmatprep.subr.mxu0 0.0
    %653 = vmatpush1.msra.mxu0 0.0
    %654 = vmatprep.subr.mxu0 0.0
    %655 = vmatpush1.msra.mxu0 0.0
    %656 = vmatprep.subr.mxu0 0.0
    %657 = vmatpush1.msra.mxu0 0.0
    %658 = vmatprep.subr.mxu0 0.0
    %659 = vmatpush1.msra.mxu0 0.0
    %660 = vmatprep.subr.mxu0 0.0
    %661 = vmatpush1.msra.mxu0 0.0
    %662 = vmatprep.subr.mxu0 0.0
    %663 = vmatpush1.msra.mxu0 0.0
    %664 = vmatprep.subr.mxu0 0.0
    %665 = vmatpush1.msra.mxu0 0.0
    %666 = vmatprep.subr.mxu0 0.0
    %667 = vmatpush1.msra.mxu0 0.0
    %668 = vmatprep.subr.mxu0 0.0
    %669 = vmatpush1.msra.mxu0 0.0
    %670 = vmatprep.subr.mxu0 0.0
    %671 = vmatpush1.msra.mxu0 0.0
    %672 = vmatprep.subr.mxu0 0.0
    %673 = vmatpush1.msra.mxu0 0.0
    %674 = vmatprep.subr.mxu0 0.0
    %675 = vmatpush1.msra.mxu0 0.0
    %676 = vmatprep.subr.mxu0 0.0
    %677 = vmatpush1.msra.mxu0 0.0
    %678 = vmatprep.subr.mxu0 0.0
    %679 = vmatpush1.msra.mxu0 0.0
    %680 = vmatprep.subr.mxu0 0.0
    %681 = vmatpush1.msra.mxu0 0.0
    %682 = vmatprep.subr.mxu0 0.0
    %683 = vmatpush1.msra.mxu0 0.0
    %684 = vmatprep.mubr.f32.mxu0 0.0
    %685 = vmatmul.mubr.f32.gmra.mrb[0].mxu0 %v609
    %v686 = vpop.f32.mrb[0].mxu0
    %v687 = vadd.f32 0.0, %v686
    %v688 = vpop.f32.mrb[0].mxu0
    %689 = vmatprep.mubr.f32.mxu0 0.0
    %690 = vmatmul.mubr.f32.gmra.mrb[0].mxu0 %v612
    %v691 = vpop.f32.mrb[0].mxu0
    %v692 = vadd.f32 0.0, %v691
    %v693 = vpop.f32.mrb[0].mxu0
    %694 = vmatprep.mubr.f32.mxu0 0.0
    %695 = vmatmul.mubr.f32.gmra.mrb[0].mxu0 %v615
    %v696 = vpop.f32.mrb[0].mxu0
    %v697 = vadd.f32 0.0, %v696
    %v698 = vpop.f32.mrb[0].mxu0
    %699 = vmatprep.mubr.f32.mxu0 0.0
    %700 = vmatmul.mubr.f32.gmra.mrb[0].mxu0 %v618
    %v701 = vpop.f32.mrb[0].mxu0
    %v702 = vadd.f32 0.0, %v701
    %v703 = vpop.f32.mrb[0].mxu0
    %704 = vdwg.mxu0
    %s705 = scalar_lea.vmem [#allocation4], 64
    %706 = vst.msk [vmem:[%s705] sm:$0xff] %vm321, %v687
    %707 = vst.msk [vmem:[%s705 + $0x8] sm:$0xff] %vm321, %v692
    %708 = vst.msk [vmem:[%s705 + $0x10] sm:$0xff] %vm321, %v697
    %709 = vst.msk [vmem:[%s705 + $0x18] sm:$0xff] %vm321, %v702
    %v710 = vld [vmem:[%s6] sm:$0xff]
    %v711 = vld [vmem:[%s6 + $0x8] sm:$0xff]
    %v712 = vld [vmem:[%s6 + $0x10] sm:$0x1]
    %v713 = vld [vmem:[%s7] sm:$0xff]
    %v714 = vld [vmem:[%s7 + $0x8] sm:$0xf]
    %v715 = vld [vmem:[%s5] sm:$0xff]
    %v716 = vld [vmem:[%s5 + $0x8] sm:$0xf]
    %vm717 = vcmask 97280
    %v719 = vsel %vm717, %v710, 0
    %v722 = vsel %vm717, %v711, 0
    %v725 = vsel %vm717, %v712, 0
    %vm727 = vcmask 1043456
    %v729 = vsel %vm727, %v716, 0
    %731 = vmatprep.subr.mxu0 0.0
    %732 = vmatpush1.msra.mxu0 %v715
    %733 = vmatprep.subr.mxu0 0.0
    %734 = vmatpush1.msra.mxu0 %v729
    %735 = vmatprep.subr.mxu0 0.0
    %736 = vmatpush1.msra.mxu0 0.0
    %737 = vmatprep.subr.mxu0 0.0
    %738 = vmatpush1.msra.mxu0 0.0
    %739 = vmatprep.subr.mxu0 0.0
    %740 = vmatpush1.msra.mxu0 0.0
    %741 = vmatprep.subr.mxu0 0.0
    %742 = vmatpush1.msra.mxu0 0.0
    %743 = vmatprep.subr.mxu0 0.0
    %744 = vmatpush1.msra.mxu0 0.0
    %745 = vmatprep.subr.mxu0 0.0
    %746 = vmatpush1.msra.mxu0 0.0
    %747 = vmatprep.subr.mxu0 0.0
    %748 = vmatpush1.msra.mxu0 0.0
    %749 = vmatprep.subr.mxu0 0.0
    %750 = vmatpush1.msra.mxu0 0.0
    %751 = vmatprep.subr.mxu0 0.0
    %752 = vmatpush1.msra.mxu0 0.0
    %753 = vmatprep.subr.mxu0 0.0
    %754 = vmatpush1.msra.mxu0 0.0
    %755 = vmatprep.subr.mxu0 0.0
    %756 = vmatpush1.msra.mxu0 0.0
    %757 = vmatprep.subr.mxu0 0.0
    %758 = vmatpush1.msra.mxu0 0.0
    %759 = vmatprep.subr.mxu0 0.0
    %760 = vmatpush1.msra.mxu0 0.0
    %761 = vmatprep.subr.mxu0 0.0
    %762 = vmatpush1.msra.mxu0 0.0
    %763 = vmatprep.subr.mxu0 0.0
    %764 = vmatpush1.msra.mxu0 0.0
    %765 = vmatprep.subr.mxu0 0.0
    %766 = vmatpush1.msra.mxu0 0.0
    %767 = vmatprep.subr.mxu0 0.0
    %768 = vmatpush1.msra.mxu0 0.0
    %769 = vmatprep.subr.mxu0 0.0
    %770 = vmatpush1.msra.mxu0 0.0
    %771 = vmatprep.subr.mxu0 0.0
    %772 = vmatpush1.msra.mxu0 0.0
    %773 = vmatprep.subr.mxu0 0.0
    %774 = vmatpush1.msra.mxu0 0.0
    %775 = vmatprep.subr.mxu0 0.0
    %776 = vmatpush1.msra.mxu0 0.0
    %777 = vmatprep.subr.mxu0 0.0
    %778 = vmatpush1.msra.mxu0 0.0
    %779 = vmatprep.subr.mxu0 0.0
    %780 = vmatpush1.msra.mxu0 0.0
    %781 = vmatprep.subr.mxu0 0.0
    %782 = vmatpush1.msra.mxu0 0.0
    %783 = vmatprep.subr.mxu0 0.0
    %784 = vmatpush1.msra.mxu0 0.0
    %785 = vmatprep.subr.mxu0 0.0
    %786 = vmatpush1.msra.mxu0 0.0
    %787 = vmatprep.subr.mxu0 0.0
    %788 = vmatpush1.msra.mxu0 0.0
    %789 = vmatprep.subr.mxu0 0.0
    %790 = vmatpush1.msra.mxu0 0.0
    %791 = vmatprep.subr.mxu0 0.0
    %792 = vmatpush1.msra.mxu0 0.0
    %793 = vmatprep.subr.mxu0 0.0
    %794 = vmatpush1.msra.mxu0 0.0
    %795 = vmatprep.mubr.f32.mxu0 0.0
    %796 = vmatmul.mubr.f32.gmra.mrb[0].mxu0 %v719
    %v797 = vpop.f32.mrb[0].mxu0
    %v798 = vadd.f32 0.0, %v797
    %v799 = vpop.f32.mrb[0].mxu0
    %800 = vmatprep.mubr.f32.mxu0 0.0
    %801 = vmatmul.mubr.f32.gmra.mrb[0].mxu0 %v722
    %v802 = vpop.f32.mrb[0].mxu0
    %v803 = vadd.f32 0.0, %v802
    %v804 = vpop.f32.mrb[0].mxu0
    %805 = vmatprep.mubr.f32.mxu0 0.0
    %806 = vmatmul.mubr.f32.gmra.mrb[0].mxu0 %v725
    %v807 = vpop.f32.mrb[0].mxu0
    %v808 = vadd.f32 0.0, %v807
    %v809 = vpop.f32.mrb[0].mxu0
    %810 = vdwg.mxu0
    %v812 = vsel %vm717, %v798, 0
    %v815 = vsel %vm717, %v803, 0
    %v818 = vsel %vm717, %v808, 0
    %v821 = vsel %vm727, %v714, 0
    %823 = vmatprep.subr.mxu0 0.0
    %824 = vmatpush1.msra.mxu0 %v713
    %825 = vmatprep.subr.mxu0 0.0
    %826 = vmatpush1.msra.mxu0 %v821
    %827 = vmatprep.subr.mxu0 0.0
    %828 = vmatpush1.msra.mxu0 0.0
    %829 = vmatprep.subr.mxu0 0.0
    %830 = vmatpush1.msra.mxu0 0.0
    %831 = vmatprep.subr.mxu0 0.0
    %832 = vmatpush1.msra.mxu0 0.0
    %833 = vmatprep.subr.mxu0 0.0
    %834 = vmatpush1.msra.mxu0 0.0
    %835 = vmatprep.subr.mxu0 0.0
    %836 = vmatpush1.msra.mxu0 0.0
    %837 = vmatprep.subr.mxu0 0.0
    %838 = vmatpush1.msra.mxu0 0.0
    %839 = vmatprep.subr.mxu0 0.0
    %840 = vmatpush1.msra.mxu0 0.0
    %841 = vmatprep.subr.mxu0 0.0
    %842 = vmatpush1.msra.mxu0 0.0
    %843 = vmatprep.subr.mxu0 0.0
    %844 = vmatpush1.msra.mxu0 0.0
    %845 = vmatprep.subr.mxu0 0.0
    %846 = vmatpush1.msra.mxu0 0.0
    %847 = vmatprep.subr.mxu0 0.0
    %848 = vmatpush1.msra.mxu0 0.0
    %849 = vmatprep.subr.mxu0 0.0
    %850 = vmatpush1.msra.mxu0 0.0
    %851 = vmatprep.subr.mxu0 0.0
    %852 = vmatpush1.msra.mxu0 0.0
    %853 = vmatprep.subr.mxu0 0.0
    %854 = vmatpush1.msra.mxu0 0.0
    %855 = vmatprep.subr.mxu0 0.0
    %856 = vmatpush1.msra.mxu0 0.0
    %857 = vmatprep.subr.mxu0 0.0
    %858 = vmatpush1.msra.mxu0 0.0
    %859 = vmatprep.subr.mxu0 0.0
    %860 = vmatpush1.msra.mxu0 0.0
    %861 = vmatprep.subr.mxu0 0.0
    %862 = vmatpush1.msra.mxu0 0.0
    %863 = vmatprep.subr.mxu0 0.0
    %864 = vmatpush1.msra.mxu0 0.0
    %865 = vmatprep.subr.mxu0 0.0
    %866 = vmatpush1.msra.mxu0 0.0
    %867 = vmatprep.subr.mxu0 0.0
    %868 = vmatpush1.msra.mxu0 0.0
    %869 = vmatprep.subr.mxu0 0.0
    %870 = vmatpush1.msra.mxu0 0.0
    %871 = vmatprep.subr.mxu0 0.0
    %872 = vmatpush1.msra.mxu0 0.0
    %873 = vmatprep.subr.mxu0 0.0
    %874 = vmatpush1.msra.mxu0 0.0
    %875 = vmatprep.subr.mxu0 0.0
    %876 = vmatpush1.msra.mxu0 0.0
    %877 = vmatprep.subr.mxu0 0.0
    %878 = vmatpush1.msra.mxu0 0.0
    %879 = vmatprep.subr.mxu0 0.0
    %880 = vmatpush1.msra.mxu0 0.0
    %881 = vmatprep.subr.mxu0 0.0
    %882 = vmatpush1.msra.mxu0 0.0
    %883 = vmatprep.subr.mxu0 0.0
    %884 = vmatpush1.msra.mxu0 0.0
    %885 = vmatprep.subr.mxu0 0.0
    %886 = vmatpush1.msra.mxu0 0.0
    %887 = vmatprep.mubr.f32.mxu0 0.0
    %888 = vmatmul.mubr.f32.gmra.mrb[0].mxu0 %v812
    %v889 = vpop.f32.mrb[0].mxu0
    %v890 = vadd.f32 0.0, %v889
    %v891 = vpop.f32.mrb[0].mxu0
    %892 = vmatprep.mubr.f32.mxu0 0.0
    %893 = vmatmul.mubr.f32.gmra.mrb[0].mxu0 %v815
    %v894 = vpop.f32.mrb[0].mxu0
    %v895 = vadd.f32 0.0, %v894
    %v896 = vpop.f32.mrb[0].mxu0
    %897 = vmatprep.mubr.f32.mxu0 0.0
    %898 = vmatmul.mubr.f32.gmra.mrb[0].mxu0 %v818
    %v899 = vpop.f32.mrb[0].mxu0
    %v900 = vadd.f32 0.0, %v899
    %v901 = vpop.f32.mrb[0].mxu0
    %902 = vdwg.mxu0
    %vm903 = vcmask 138240
    %904 = vst.msk [vmem:[%s10] sm:$0xff] %vm903, %v890
    %905 = vst.msk [vmem:[%s10 + $0x8] sm:$0xff] %vm903, %v895
    %vm906 = vcmask 131072
    %907 = vst.msk [vmem:[%s10 + $0x10] sm:$0x1] %vm906, %v900
    %s908 = scalar_lea.vmem %s5, 16
    %v909 = vld [vmem:[%s908] sm:$0xff]
    %v910 = vld [vmem:[%s908 + $0x8] sm:$0xf]
    %v912 = vsel %vm727, %v910, 0
    %914 = vmatprep.subr.mxu0 0.0
    %915 = vmatpush1.msra.mxu0 %v909
    %916 = vmatprep.subr.mxu0 0.0
    %917 = vmatpush1.msra.mxu0 %v912
    %918 = vmatprep.subr.mxu0 0.0
    %919 = vmatpush1.msra.mxu0 0.0
    %920 = vmatprep.subr.mxu0 0.0
    %921 = vmatpush1.msra.mxu0 0.0
    %922 = vmatprep.subr.mxu0 0.0
    %923 = vmatpush1.msra.mxu0 0.0
    %924 = vmatprep.subr.mxu0 0.0
    %925 = vmatpush1.msra.mxu0 0.0
    %926 = vmatprep.subr.mxu0 0.0
    %927 = vmatpush1.msra.mxu0 0.0
    %928 = vmatprep.subr.mxu0 0.0
    %929 = vmatpush1.msra.mxu0 0.0
    %930 = vmatprep.subr.mxu0 0.0
    %931 = vmatpush1.msra.mxu0 0.0
    %932 = vmatprep.subr.mxu0 0.0
    %933 = vmatpush1.msra.mxu0 0.0
    %934 = vmatprep.subr.mxu0 0.0
    %935 = vmatpush1.msra.mxu0 0.0
    %936 = vmatprep.subr.mxu0 0.0
    %937 = vmatpush1.msra.mxu0 0.0
    %938 = vmatprep.subr.mxu0 0.0
    %939 = vmatpush1.msra.mxu0 0.0
    %940 = vmatprep.subr.mxu0 0.0
    %941 = vmatpush1.msra.mxu0 0.0
    %942 = vmatprep.subr.mxu0 0.0
    %943 = vmatpush1.msra.mxu0 0.0
    %944 = vmatprep.subr.mxu0 0.0
    %945 = vmatpush1.msra.mxu0 0.0
    %946 = vmatprep.subr.mxu0 0.0
    %947 = vmatpush1.msra.mxu0 0.0
    %948 = vmatprep.subr.mxu0 0.0
    %949 = vmatpush1.msra.mxu0 0.0
    %950 = vmatprep.subr.mxu0 0.0
    %951 = vmatpush1.msra.mxu0 0.0
    %952 = vmatprep.subr.mxu0 0.0
    %953 = vmatpush1.msra.mxu0 0.0
    %954 = vmatprep.subr.mxu0 0.0
    %955 = vmatpush1.msra.mxu0 0.0
    %956 = vmatprep.subr.mxu0 0.0
    %957 = vmatpush1.msra.mxu0 0.0
    %958 = vmatprep.subr.mxu0 0.0
    %959 = vmatpush1.msra.mxu0 0.0
    %960 = vmatprep.subr.mxu0 0.0
    %961 = vmatpush1.msra.mxu0 0.0
    %962 = vmatprep.subr.mxu0 0.0
    %963 = vmatpush1.msra.mxu0 0.0
    %964 = vmatprep.subr.mxu0 0.0
    %965 = vmatpush1.msra.mxu0 0.0
    %966 = vmatprep.subr.mxu0 0.0
    %967 = vmatpush1.msra.mxu0 0.0
    %968 = vmatprep.subr.mxu0 0.0
    %969 = vmatpush1.msra.mxu0 0.0
    %970 = vmatprep.subr.mxu0 0.0
    %971 = vmatpush1.msra.mxu0 0.0
    %972 = vmatprep.subr.mxu0 0.0
    %973 = vmatpush1.msra.mxu0 0.0
    %974 = vmatprep.subr.mxu0 0.0
    %975 = vmatpush1.msra.mxu0 0.0
    %976 = vmatprep.subr.mxu0 0.0
    %977 = vmatpush1.msra.mxu0 0.0
    %978 = vmatprep.mubr.f32.mxu0 0.0
    %979 = vmatmul.mubr.f32.gmra.mrb[0].mxu0 %v719
    %v980 = vpop.f32.mrb[0].mxu0
    %v981 = vadd.f32 0.0, %v980
    %v982 = vpop.f32.mrb[0].mxu0
    %983 = vmatprep.mubr.f32.mxu0 0.0
    %984 = vmatmul.mubr.f32.gmra.mrb[0].mxu0 %v722
    %v985 = vpop.f32.mrb[0].mxu0
    %v986 = vadd.f32 0.0, %v985
    %v987 = vpop.f32.mrb[0].mxu0
    %988 = vmatprep.mubr.f32.mxu0 0.0
    %989 = vmatmul.mubr.f32.gmra.mrb[0].mxu0 %v725
    %v990 = vpop.f32.mrb[0].mxu0
    %v991 = vadd.f32 0.0, %v990
    %v992 = vpop.f32.mrb[0].mxu0
    %993 = vdwg.mxu0
    %v995 = vsel %vm717, %v981, 0
    %v998 = vsel %vm717, %v986, 0
    %v1001 = vsel %vm717, %v991, 0
    %1003 = vmatprep.subr.mxu0 0.0
    %1004 = vmatpush1.msra.mxu0 %v713
    %1005 = vmatprep.subr.mxu0 0.0
    %1006 = vmatpush1.msra.mxu0 %v821
    %1007 = vmatprep.subr.mxu0 0.0
    %1008 = vmatpush1.msra.mxu0 0.0
    %1009 = vmatprep.subr.mxu0 0.0
    %1010 = vmatpush1.msra.mxu0 0.0
    %1011 = vmatprep.subr.mxu0 0.0
    %1012 = vmatpush1.msra.mxu0 0.0
    %1013 = vmatprep.subr.mxu0 0.0
    %1014 = vmatpush1.msra.mxu0 0.0
    %1015 = vmatprep.subr.mxu0 0.0
    %1016 = vmatpush1.msra.mxu0 0.0
    %1017 = vmatprep.subr.mxu0 0.0
    %1018 = vmatpush1.msra.mxu0 0.0
    %1019 = vmatprep.subr.mxu0 0.0
    %1020 = vmatpush1.msra.mxu0 0.0
    %1021 = vmatprep.subr.mxu0 0.0
    %1022 = vmatpush1.msra.mxu0 0.0
    %1023 = vmatprep.subr.mxu0 0.0
    %1024 = vmatpush1.msra.mxu0 0.0
    %1025 = vmatprep.subr.mxu0 0.0
    %1026 = vmatpush1.msra.mxu0 0.0
    %1027 = vmatprep.subr.mxu0 0.0
    %1028 = vmatpush1.msra.mxu0 0.0
    %1029 = vmatprep.subr.mxu0 0.0
    %1030 = vmatpush1.msra.mxu0 0.0
    %1031 = vmatprep.subr.mxu0 0.0
    %1032 = vmatpush1.msra.mxu0 0.0
    %1033 = vmatprep.subr.mxu0 0.0
    %1034 = vmatpush1.msra.mxu0 0.0
    %1035 = vmatprep.subr.mxu0 0.0
    %1036 = vmatpush1.msra.mxu0 0.0
    %1037 = vmatprep.subr.mxu0 0.0
    %1038 = vmatpush1.msra.mxu0 0.0
    %1039 = vmatprep.subr.mxu0 0.0
    %1040 = vmatpush1.msra.mxu0 0.0
    %1041 = vmatprep.subr.mxu0 0.0
    %1042 = vmatpush1.msra.mxu0 0.0
    %1043 = vmatprep.subr.mxu0 0.0
    %1044 = vmatpush1.msra.mxu0 0.0
    %1045 = vmatprep.subr.mxu0 0.0
    %1046 = vmatpush1.msra.mxu0 0.0
    %1047 = vmatprep.subr.mxu0 0.0
    %1048 = vmatpush1.msra.mxu0 0.0
    %1049 = vmatprep.subr.mxu0 0.0
    %1050 = vmatpush1.msra.mxu0 0.0
    %1051 = vmatprep.subr.mxu0 0.0
    %1052 = vmatpush1.msra.mxu0 0.0
    %1053 = vmatprep.subr.mxu0 0.0
    %1054 = vmatpush1.msra.mxu0 0.0
    %1055 = vmatprep.subr.mxu0 0.0
    %1056 = vmatpush1.msra.mxu0 0.0
    %1057 = vmatprep.subr.mxu0 0.0
    %1058 = vmatpush1.msra.mxu0 0.0
    %1059 = vmatprep.subr.mxu0 0.0
    %1060 = vmatpush1.msra.mxu0 0.0
    %1061 = vmatprep.subr.mxu0 0.0
    %1062 = vmatpush1.msra.mxu0 0.0
    %1063 = vmatprep.subr.mxu0 0.0
    %1064 = vmatpush1.msra.mxu0 0.0
    %1065 = vmatprep.subr.mxu0 0.0
    %1066 = vmatpush1.msra.mxu0 0.0
    %1067 = vmatprep.mubr.f32.mxu0 0.0
    %1068 = vmatmul.mubr.f32.gmra.mrb[0].mxu0 %v995
    %v1069 = vpop.f32.mrb[0].mxu0
    %v1070 = vadd.f32 0.0, %v1069
    %v1071 = vpop.f32.mrb[0].mxu0
    %1072 = vmatprep.mubr.f32.mxu0 0.0
    %1073 = vmatmul.mubr.f32.gmra.mrb[0].mxu0 %v998
    %v1074 = vpop.f32.mrb[0].mxu0
    %v1075 = vadd.f32 0.0, %v1074
    %v1076 = vpop.f32.mrb[0].mxu0
    %1077 = vmatprep.mubr.f32.mxu0 0.0
    %1078 = vmatmul.mubr.f32.gmra.mrb[0].mxu0 %v1001
    %v1079 = vpop.f32.mrb[0].mxu0
    %v1080 = vadd.f32 0.0, %v1079
    %v1081 = vpop.f32.mrb[0].mxu0
    %1082 = vdwg.mxu0
    %s1083 = scalar_lea.vmem %s10, 24
    %1084 = vst.msk [vmem:[%s1083] sm:$0xff] %vm903, %v1070
    %1085 = vst.msk [vmem:[%s1083 + $0x8] sm:$0xff] %vm903, %v1075
    %1086 = vst.msk [vmem:[%s1083 + $0x10] sm:$0x1] %vm906, %v1080
    %s1087 = scalar_lea.vmem %s5, 32
    %v1088 = vld [vmem:[%s1087] sm:$0xff]
    %v1089 = vld [vmem:[%s1087 + $0x8] sm:$0xf]
    %v1091 = vsel %vm727, %v1089, 0
    %1093 = vmatprep.subr.mxu0 0.0
    %1094 = vmatpush1.msra.mxu0 %v1088
    %1095 = vmatprep.subr.mxu0 0.0
    %1096 = vmatpush1.msra.mxu0 %v1091
    %1097 = vmatprep.subr.mxu0 0.0
    %1098 = vmatpush1.msra.mxu0 0.0
    %1099 = vmatprep.subr.mxu0 0.0
    %1100 = vmatpush1.msra.mxu0 0.0
    %1101 = vmatprep.subr.mxu0 0.0
    %1102 = vmatpush1.msra.mxu0 0.0
    %1103 = vmatprep.subr.mxu0 0.0
    %1104 = vmatpush1.msra.mxu0 0.0
    %1105 = vmatprep.subr.mxu0 0.0
    %1106 = vmatpush1.msra.mxu0 0.0
    %1107 = vmatprep.subr.mxu0 0.0
    %1108 = vmatpush1.msra.mxu0 0.0
    %1109 = vmatprep.subr.mxu0 0.0
    %1110 = vmatpush1.msra.mxu0 0.0
    %1111 = vmatprep.subr.mxu0 0.0
    %1112 = vmatpush1.msra.mxu0 0.0
    %1113 = vmatprep.subr.mxu0 0.0
    %1114 = vmatpush1.msra.mxu0 0.0
    %1115 = vmatprep.subr.mxu0 0.0
    %1116 = vmatpush1.msra.mxu0 0.0
    %1117 = vmatprep.subr.mxu0 0.0
    %1118 = vmatpush1.msra.mxu0 0.0
    %1119 = vmatprep.subr.mxu0 0.0
    %1120 = vmatpush1.msra.mxu0 0.0
    %1121 = vmatprep.subr.mxu0 0.0
    %1122 = vmatpush1.msra.mxu0 0.0
    %1123 = vmatprep.subr.mxu0 0.0
    %1124 = vmatpush1.msra.mxu0 0.0
    %1125 = vmatprep.subr.mxu0 0.0
    %1126 = vmatpush1.msra.mxu0 0.0
    %1127 = vmatprep.subr.mxu0 0.0
    %1128 = vmatpush1.msra.mxu0 0.0
    %1129 = vmatprep.subr.mxu0 0.0
    %1130 = vmatpush1.msra.mxu0 0.0
    %1131 = vmatprep.subr.mxu0 0.0
    %1132 = vmatpush1.msra.mxu0 0.0
    %1133 = vmatprep.subr.mxu0 0.0
    %1134 = vmatpush1.msra.mxu0 0.0
    %1135 = vmatprep.subr.mxu0 0.0
    %1136 = vmatpush1.msra.mxu0 0.0
    %1137 = vmatprep.subr.mxu0 0.0
    %1138 = vmatpush1.msra.mxu0 0.0
    %1139 = vmatprep.subr.mxu0 0.0
    %1140 = vmatpush1.msra.mxu0 0.0
    %1141 = vmatprep.subr.mxu0 0.0
    %1142 = vmatpush1.msra.mxu0 0.0
    %1143 = vmatprep.subr.mxu0 0.0
    %1144 = vmatpush1.msra.mxu0 0.0
    %1145 = vmatprep.subr.mxu0 0.0
    %1146 = vmatpush1.msra.mxu0 0.0
    %1147 = vmatprep.subr.mxu0 0.0
    %1148 = vmatpush1.msra.mxu0 0.0
    %1149 = vmatprep.subr.mxu0 0.0
    %1150 = vmatpush1.msra.mxu0 0.0
    %1151 = vmatprep.subr.mxu0 0.0
    %1152 = vmatpush1.msra.mxu0 0.0
    %1153 = vmatprep.subr.mxu0 0.0
    %1154 = vmatpush1.msra.mxu0 0.0
    %1155 = vmatprep.subr.mxu0 0.0
    %1156 = vmatpush1.msra.mxu0 0.0
    %1157 = vmatprep.mubr.f32.mxu0 0.0
    %1158 = vmatmul.mubr.f32.gmra.mrb[0].mxu0 %v719
    %v1159 = vpop.f32.mrb[0].mxu0
    %v1160 = vadd.f32 0.0, %v1159
    %v1161 = vpop.f32.mrb[0].mxu0
    %1162 = vmatprep.mubr.f32.mxu0 0.0
    %1163 = vmatmul.mubr.f32.gmra.mrb[0].mxu0 %v722
    %v1164 = vpop.f32.mrb[0].mxu0
    %v1165 = vadd.f32 0.0, %v1164
    %v1166 = vpop.f32.mrb[0].mxu0
    %1167 = vmatprep.mubr.f32.mxu0 0.0
    %1168 = vmatmul.mubr.f32.gmra.mrb[0].mxu0 %v725
    %v1169 = vpop.f32.mrb[0].mxu0
    %v1170 = vadd.f32 0.0, %v1169
    %v1171 = vpop.f32.mrb[0].mxu0
    %1172 = vdwg.mxu0
    %v1174 = vsel %vm717, %v1160, 0
    %v1177 = vsel %vm717, %v1165, 0
    %v1180 = vsel %vm717, %v1170, 0
    %1182 = vmatprep.subr.mxu0 0.0
    %1183 = vmatpush1.msra.mxu0 %v713
    %1184 = vmatprep.subr.mxu0 0.0
    %1185 = vmatpush1.msra.mxu0 %v821
    %1186 = vmatprep.subr.mxu0 0.0
    %1187 = vmatpush1.msra.mxu0 0.0
    %1188 = vmatprep.subr.mxu0 0.0
    %1189 = vmatpush1.msra.mxu0 0.0
    %1190 = vmatprep.subr.mxu0 0.0
    %1191 = vmatpush1.msra.mxu0 0.0
    %1192 = vmatprep.subr.mxu0 0.0
    %1193 = vmatpush1.msra.mxu0 0.0
    %1194 = vmatprep.subr.mxu0 0.0
    %1195 = vmatpush1.msra.mxu0 0.0
    %1196 = vmatprep.subr.mxu0 0.0
    %1197 = vmatpush1.msra.mxu0 0.0
    %1198 = vmatprep.subr.mxu0 0.0
    %1199 = vmatpush1.msra.mxu0 0.0
    %1200 = vmatprep.subr.mxu0 0.0
    %1201 = vmatpush1.msra.mxu0 0.0
    %1202 = vmatprep.subr.mxu0 0.0
    %1203 = vmatpush1.msra.mxu0 0.0
    %1204 = vmatprep.subr.mxu0 0.0
    %1205 = vmatpush1.msra.mxu0 0.0
    %1206 = vmatprep.subr.mxu0 0.0
    %1207 = vmatpush1.msra.mxu0 0.0
    %1208 = vmatprep.subr.mxu0 0.0
    %1209 = vmatpush1.msra.mxu0 0.0
    %1210 = vmatprep.subr.mxu0 0.0
    %1211 = vmatpush1.msra.mxu0 0.0
    %1212 = vmatprep.subr.mxu0 0.0
    %1213 = vmatpush1.msra.mxu0 0.0
    %1214 = vmatprep.subr.mxu0 0.0
    %1215 = vmatpush1.msra.mxu0 0.0
    %1216 = vmatprep.subr.mxu0 0.0
    %1217 = vmatpush1.msra.mxu0 0.0
    %1218 = vmatprep.subr.mxu0 0.0
    %1219 = vmatpush1.msra.mxu0 0.0
    %1220 = vmatprep.subr.mxu0 0.0
    %1221 = vmatpush1.msra.mxu0 0.0
    %1222 = vmatprep.subr.mxu0 0.0
    %1223 = vmatpush1.msra.mxu0 0.0
    %1224 = vmatprep.subr.mxu0 0.0
    %1225 = vmatpush1.msra.mxu0 0.0
    %1226 = vmatprep.subr.mxu0 0.0
    %1227 = vmatpush1.msra.mxu0 0.0
    %1228 = vmatprep.subr.mxu0 0.0
    %1229 = vmatpush1.msra.mxu0 0.0
    %1230 = vmatprep.subr.mxu0 0.0
    %1231 = vmatpush1.msra.mxu0 0.0
    %1232 = vmatprep.subr.mxu0 0.0
    %1233 = vmatpush1.msra.mxu0 0.0
    %1234 = vmatprep.subr.mxu0 0.0
    %1235 = vmatpush1.msra.mxu0 0.0
    %1236 = vmatprep.subr.mxu0 0.0
    %1237 = vmatpush1.msra.mxu0 0.0
    %1238 = vmatprep.subr.mxu0 0.0
    %1239 = vmatpush1.msra.mxu0 0.0
    %1240 = vmatprep.subr.mxu0 0.0
    %1241 = vmatpush1.msra.mxu0 0.0
    %1242 = vmatprep.subr.mxu0 0.0
    %1243 = vmatpush1.msra.mxu0 0.0
    %1244 = vmatprep.subr.mxu0 0.0
    %1245 = vmatpush1.msra.mxu0 0.0
    %1246 = vmatprep.mubr.f32.mxu0 0.0
    %1247 = vmatmul.mubr.f32.gmra.mrb[0].mxu0 %v1174
    %v1248 = vpop.f32.mrb[0].mxu0
    %v1249 = vadd.f32 0.0, %v1248
    %v1250 = vpop.f32.mrb[0].mxu0
    %1251 = vmatprep.mubr.f32.mxu0 0.0
    %1252 = vmatmul.mubr.f32.gmra.mrb[0].mxu0 %v1177
    %v1253 = vpop.f32.mrb[0].mxu0
    %v1254 = vadd.f32 0.0, %v1253
    %v1255 = vpop.f32.mrb[0].mxu0
    %1256 = vmatprep.mubr.f32.mxu0 0.0
    %1257 = vmatmul.mubr.f32.gmra.mrb[0].mxu0 %v1180
    %v1258 = vpop.f32.mrb[0].mxu0
    %v1259 = vadd.f32 0.0, %v1258
    %v1260 = vpop.f32.mrb[0].mxu0
    %1261 = vdwg.mxu0
    %s1262 = scalar_lea.vmem %s10, 48
    %1263 = vst.msk [vmem:[%s1262] sm:$0xff] %vm903, %v1249
    %1264 = vst.msk [vmem:[%s1262 + $0x8] sm:$0xff] %vm903, %v1254
    %1265 = vst.msk [vmem:[%s1262 + $0x10] sm:$0x1] %vm906, %v1259
    %s1266 = scalar_lea.vmem %s5, 48
    %v1267 = vld [vmem:[%s1266] sm:$0xff]
    %v1268 = vld [vmem:[%s1266 + $0x8] sm:$0xf]
    %v1270 = vsel %vm727, %v1268, 0
    %1272 = vmatprep.subr.mxu0 0.0
    %1273 = vmatpush1.msra.mxu0 %v1267
    %1274 = vmatprep.subr.mxu0 0.0
    %1275 = vmatpush1.msra.mxu0 %v1270
    %1276 = vmatprep.subr.mxu0 0.0
    %1277 = vmatpush1.msra.mxu0 0.0
    %1278 = vmatprep.subr.mxu0 0.0
    %1279 = vmatpush1.msra.mxu0 0.0
    %1280 = vmatprep.subr.mxu0 0.0
    %1281 = vmatpush1.msra.mxu0 0.0
    %1282 = vmatprep.subr.mxu0 0.0
    %1283 = vmatpush1.msra.mxu0 0.0
    %1284 = vmatprep.subr.mxu0 0.0
    %1285 = vmatpush1.msra.mxu0 0.0
    %1286 = vmatprep.subr.mxu0 0.0
    %1287 = vmatpush1.msra.mxu0 0.0
    %1288 = vmatprep.subr.mxu0 0.0
    %1289 = vmatpush1.msra.mxu0 0.0
    %1290 = vmatprep.subr.mxu0 0.0
    %1291 = vmatpush1.msra.mxu0 0.0
    %1292 = vmatprep.subr.mxu0 0.0
    %1293 = vmatpush1.msra.mxu0 0.0
    %1294 = vmatprep.subr.mxu0 0.0
    %1295 = vmatpush1.msra.mxu0 0.0
    %1296 = vmatprep.subr.mxu0 0.0
    %1297 = vmatpush1.msra.mxu0 0.0
    %1298 = vmatprep.subr.mxu0 0.0
    %1299 = vmatpush1.msra.mxu0 0.0
    %1300 = vmatprep.subr.mxu0 0.0
    %1301 = vmatpush1.msra.mxu0 0.0
    %1302 = vmatprep.subr.mxu0 0.0
    %1303 = vmatpush1.msra.mxu0 0.0
    %1304 = vmatprep.subr.mxu0 0.0
    %1305 = vmatpush1.msra.mxu0 0.0
    %1306 = vmatprep.subr.mxu0 0.0
    %1307 = vmatpush1.msra.mxu0 0.0
    %1308 = vmatprep.subr.mxu0 0.0
    %1309 = vmatpush1.msra.mxu0 0.0
    %1310 = vmatprep.subr.mxu0 0.0
    %1311 = vmatpush1.msra.mxu0 0.0
    %1312 = vmatprep.subr.mxu0 0.0
    %1313 = vmatpush1.msra.mxu0 0.0
    %1314 = vmatprep.subr.mxu0 0.0
    %1315 = vmatpush1.msra.mxu0 0.0
    %1316 = vmatprep.subr.mxu0 0.0
    %1317 = vmatpush1.msra.mxu0 0.0
    %1318 = vmatprep.subr.mxu0 0.0
    %1319 = vmatpush1.msra.mxu0 0.0
    %1320 = vmatprep.subr.mxu0 0.0
    %1321 = vmatpush1.msra.mxu0 0.0
    %1322 = vmatprep.subr.mxu0 0.0
    %1323 = vmatpush1.msra.mxu0 0.0
    %1324 = vmatprep.subr.mxu0 0.0
    %1325 = vmatpush1.msra.mxu0 0.0
    %1326 = vmatprep.subr.mxu0 0.0
    %1327 = vmatpush1.msra.mxu0 0.0
    %1328 = vmatprep.subr.mxu0 0.0
    %1329 = vmatpush1.msra.mxu0 0.0
    %1330 = vmatprep.subr.mxu0 0.0
    %1331 = vmatpush1.msra.mxu0 0.0
    %1332 = vmatprep.subr.mxu0 0.0
    %1333 = vmatpush1.msra.mxu0 0.0
    %1334 = vmatprep.subr.mxu0 0.0
    %1335 = vmatpush1.msra.mxu0 0.0
    %1336 = vmatprep.mubr.f32.mxu0 0.0
    %1337 = vmatmul.mubr.f32.gmra.mrb[0].mxu0 %v719
    %v1338 = vpop.f32.mrb[0].mxu0
    %v1339 = vadd.f32 0.0, %v1338
    %v1340 = vpop.f32.mrb[0].mxu0
    %1341 = vmatprep.mubr.f32.mxu0 0.0
    %1342 = vmatmul.mubr.f32.gmra.mrb[0].mxu0 %v722
    %v1343 = vpop.f32.mrb[0].mxu0
    %v1344 = vadd.f32 0.0, %v1343
    %v1345 = vpop.f32.mrb[0].mxu0
    %1346 = vmatprep.mubr.f32.mxu0 0.0
    %1347 = vmatmul.mubr.f32.gmra.mrb[0].mxu0 %v725
    %v1348 = vpop.f32.mrb[0].mxu0
    %v1349 = vadd.f32 0.0, %v1348
    %v1350 = vpop.f32.mrb[0].mxu0
    %1351 = vdwg.mxu0
    %v1353 = vsel %vm717, %v1339, 0
    %v1356 = vsel %vm717, %v1344, 0
    %v1359 = vsel %vm717, %v1349, 0
    %1361 = vmatprep.subr.mxu0 0.0
    %1362 = vmatpush1.msra.mxu0 %v713
    %1363 = vmatprep.subr.mxu0 0.0
    %1364 = vmatpush1.msra.mxu0 %v821
    %1365 = vmatprep.subr.mxu0 0.0
    %1366 = vmatpush1.msra.mxu0 0.0
    %1367 = vmatprep.subr.mxu0 0.0
    %1368 = vmatpush1.msra.mxu0 0.0
    %1369 = vmatprep.subr.mxu0 0.0
    %1370 = vmatpush1.msra.mxu0 0.0
    %1371 = vmatprep.subr.mxu0 0.0
    %1372 = vmatpush1.msra.mxu0 0.0
    %1373 = vmatprep.subr.mxu0 0.0
    %1374 = vmatpush1.msra.mxu0 0.0
    %1375 = vmatprep.subr.mxu0 0.0
    %1376 = vmatpush1.msra.mxu0 0.0
    %1377 = vmatprep.subr.mxu0 0.0
    %1378 = vmatpush1.msra.mxu0 0.0
    %1379 = vmatprep.subr.mxu0 0.0
    %1380 = vmatpush1.msra.mxu0 0.0
    %1381 = vmatprep.subr.mxu0 0.0
    %1382 = vmatpush1.msra.mxu0 0.0
    %1383 = vmatprep.subr.mxu0 0.0
    %1384 = vmatpush1.msra.mxu0 0.0
    %1385 = vmatprep.subr.mxu0 0.0
    %1386 = vmatpush1.msra.mxu0 0.0
    %1387 = vmatprep.subr.mxu0 0.0
    %1388 = vmatpush1.msra.mxu0 0.0
    %1389 = vmatprep.subr.mxu0 0.0
    %1390 = vmatpush1.msra.mxu0 0.0
    %1391 = vmatprep.subr.mxu0 0.0
    %1392 = vmatpush1.msra.mxu0 0.0
    %1393 = vmatprep.subr.mxu0 0.0
    %1394 = vmatpush1.msra.mxu0 0.0
    %1395 = vmatprep.subr.mxu0 0.0
    %1396 = vmatpush1.msra.mxu0 0.0
    %1397 = vmatprep.subr.mxu0 0.0
    %1398 = vmatpush1.msra.mxu0 0.0
    %1399 = vmatprep.subr.mxu0 0.0
    %1400 = vmatpush1.msra.mxu0 0.0
    %1401 = vmatprep.subr.mxu0 0.0
    %1402 = vmatpush1.msra.mxu0 0.0
    %1403 = vmatprep.subr.mxu0 0.0
    %1404 = vmatpush1.msra.mxu0 0.0
    %1405 = vmatprep.subr.mxu0 0.0
    %1406 = vmatpush1.msra.mxu0 0.0
    %1407 = vmatprep.subr.mxu0 0.0
    %1408 = vmatpush1.msra.mxu0 0.0
    %1409 = vmatprep.subr.mxu0 0.0
    %1410 = vmatpush1.msra.mxu0 0.0
    %1411 = vmatprep.subr.mxu0 0.0
    %1412 = vmatpush1.msra.mxu0 0.0
    %1413 = vmatprep.subr.mxu0 0.0
    %1414 = vmatpush1.msra.mxu0 0.0
    %1415 = vmatprep.subr.mxu0 0.0
    %1416 = vmatpush1.msra.mxu0 0.0
    %1417 = vmatprep.subr.mxu0 0.0
    %1418 = vmatpush1.msra.mxu0 0.0
    %1419 = vmatprep.subr.mxu0 0.0
    %1420 = vmatpush1.msra.mxu0 0.0
    %1421 = vmatprep.subr.mxu0 0.0
    %1422 = vmatpush1.msra.mxu0 0.0
    %1423 = vmatprep.subr.mxu0 0.0
    %1424 = vmatpush1.msra.mxu0 0.0
    %1425 = vmatprep.mubr.f32.mxu0 0.0
    %1426 = vmatmul.mubr.f32.gmra.mrb[0].mxu0 %v1353
    %v1427 = vpop.f32.mrb[0].mxu0
    %v1428 = vadd.f32 0.0, %v1427
    %v1429 = vpop.f32.mrb[0].mxu0
    %1430 = vmatprep.mubr.f32.mxu0 0.0
    %1431 = vmatmul.mubr.f32.gmra.mrb[0].mxu0 %v1356
    %v1432 = vpop.f32.mrb[0].mxu0
    %v1433 = vadd.f32 0.0, %v1432
    %v1434 = vpop.f32.mrb[0].mxu0
    %1435 = vmatprep.mubr.f32.mxu0 0.0
    %1436 = vmatmul.mubr.f32.gmra.mrb[0].mxu0 %v1359
    %v1437 = vpop.f32.mrb[0].mxu0
    %v1438 = vadd.f32 0.0, %v1437
    %v1439 = vpop.f32.mrb[0].mxu0
    %1440 = vdwg.mxu0
    %s1441 = scalar_lea.vmem %s10, 72
    %1442 = vst.msk [vmem:[%s1441] sm:$0xff] %vm903, %v1428
    %1443 = vst.msk [vmem:[%s1441 + $0x8] sm:$0xff] %vm903, %v1433
    %1444 = vst.msk [vmem:[%s1441 + $0x10] sm:$0x1] %vm906, %v1438
    %s1445 = scalar_lea.vmem %s5, 64
    %v1446 = vld [vmem:[%s1445] sm:$0xff]
    %v1447 = vld [vmem:[%s1445 + $0x8] sm:$0xf]
    %v1449 = vsel %vm727, %v1447, 0
    %1451 = vmatprep.subr.mxu0 0.0
    %1452 = vmatpush1.msra.mxu0 %v1446
    %1453 = vmatprep.subr.mxu0 0.0
    %1454 = vmatpush1.msra.mxu0 %v1449
    %1455 = vmatprep.subr.mxu0 0.0
    %1456 = vmatpush1.msra.mxu0 0.0
    %1457 = vmatprep.subr.mxu0 0.0
    %1458 = vmatpush1.msra.mxu0 0.0
    %1459 = vmatprep.subr.mxu0 0.0
    %1460 = vmatpush1.msra.mxu0 0.0
    %1461 = vmatprep.subr.mxu0 0.0
    %1462 = vmatpush1.msra.mxu0 0.0
    %1463 = vmatprep.subr.mxu0 0.0
    %1464 = vmatpush1.msra.mxu0 0.0
    %1465 = vmatprep.subr.mxu0 0.0
    %1466 = vmatpush1.msra.mxu0 0.0
    %1467 = vmatprep.subr.mxu0 0.0
    %1468 = vmatpush1.msra.mxu0 0.0
    %1469 = vmatprep.subr.mxu0 0.0
    %1470 = vmatpush1.msra.mxu0 0.0
    %1471 = vmatprep.subr.mxu0 0.0
    %1472 = vmatpush1.msra.mxu0 0.0
    %1473 = vmatprep.subr.mxu0 0.0
    %1474 = vmatpush1.msra.mxu0 0.0
    %1475 = vmatprep.subr.mxu0 0.0
    %1476 = vmatpush1.msra.mxu0 0.0
    %1477 = vmatprep.subr.mxu0 0.0
    %1478 = vmatpush1.msra.mxu0 0.0
    %1479 = vmatprep.subr.mxu0 0.0
    %1480 = vmatpush1.msra.mxu0 0.0
    %1481 = vmatprep.subr.mxu0 0.0
    %1482 = vmatpush1.msra.mxu0 0.0
    %1483 = vmatprep.subr.mxu0 0.0
    %1484 = vmatpush1.msra.mxu0 0.0
    %1485 = vmatprep.subr.mxu0 0.0
    %1486 = vmatpush1.msra.mxu0 0.0
    %1487 = vmatprep.subr.mxu0 0.0
    %1488 = vmatpush1.msra.mxu0 0.0
    %1489 = vmatprep.subr.mxu0 0.0
    %1490 = vmatpush1.msra.mxu0 0.0
    %1491 = vmatprep.subr.mxu0 0.0
    %1492 = vmatpush1.msra.mxu0 0.0
    %1493 = vmatprep.subr.mxu0 0.0
    %1494 = vmatpush1.msra.mxu0 0.0
    %1495 = vmatprep.subr.mxu0 0.0
    %1496 = vmatpush1.msra.mxu0 0.0
    %1497 = vmatprep.subr.mxu0 0.0
    %1498 = vmatpush1.msra.mxu0 0.0
    %1499 = vmatprep.subr.mxu0 0.0
    %1500 = vmatpush1.msra.mxu0 0.0
    %1501 = vmatprep.subr.mxu0 0.0
    %1502 = vmatpush1.msra.mxu0 0.0
    %1503 = vmatprep.subr.mxu0 0.0
    %1504 = vmatpush1.msra.mxu0 0.0
    %1505 = vmatprep.subr.mxu0 0.0
    %1506 = vmatpush1.msra.mxu0 0.0
    %1507 = vmatprep.subr.mxu0 0.0
    %1508 = vmatpush1.msra.mxu0 0.0
    %1509 = vmatprep.subr.mxu0 0.0
    %1510 = vmatpush1.msra.mxu0 0.0
    %1511 = vmatprep.subr.mxu0 0.0
    %1512 = vmatpush1.msra.mxu0 0.0
    %1513 = vmatprep.subr.mxu0 0.0
    %1514 = vmatpush1.msra.mxu0 0.0
    %1515 = vmatprep.mubr.f32.mxu0 0.0
    %1516 = vmatmul.mubr.f32.gmra.mrb[0].mxu0 %v719
    %v1517 = vpop.f32.mrb[0].mxu0
    %v1518 = vadd.f32 0.0, %v1517
    %v1519 = vpop.f32.mrb[0].mxu0
    %1520 = vmatprep.mubr.f32.mxu0 0.0
    %1521 = vmatmul.mubr.f32.gmra.mrb[0].mxu0 %v722
    %v1522 = vpop.f32.mrb[0].mxu0
    %v1523 = vadd.f32 0.0, %v1522
    %v1524 = vpop.f32.mrb[0].mxu0
    %1525 = vmatprep.mubr.f32.mxu0 0.0
    %1526 = vmatmul.mubr.f32.gmra.mrb[0].mxu0 %v725
    %v1527 = vpop.f32.mrb[0].mxu0
    %v1528 = vadd.f32 0.0, %v1527
    %v1529 = vpop.f32.mrb[0].mxu0
    %1530 = vdwg.mxu0
    %v1532 = vsel %vm717, %v1518, 0
    %v1535 = vsel %vm717, %v1523, 0
    %v1538 = vsel %vm717, %v1528, 0
    %1540 = vmatprep.subr.mxu0 0.0
    %1541 = vmatpush1.msra.mxu0 %v713
    %1542 = vmatprep.subr.mxu0 0.0
    %1543 = vmatpush1.msra.mxu0 %v821
    %1544 = vmatprep.subr.mxu0 0.0
    %1545 = vmatpush1.msra.mxu0 0.0
    %1546 = vmatprep.subr.mxu0 0.0
    %1547 = vmatpush1.msra.mxu0 0.0
    %1548 = vmatprep.subr.mxu0 0.0
    %1549 = vmatpush1.msra.mxu0 0.0
    %1550 = vmatprep.subr.mxu0 0.0
    %1551 = vmatpush1.msra.mxu0 0.0
    %1552 = vmatprep.subr.mxu0 0.0
    %1553 = vmatpush1.msra.mxu0 0.0
    %1554 = vmatprep.subr.mxu0 0.0
    %1555 = vmatpush1.msra.mxu0 0.0
    %1556 = vmatprep.subr.mxu0 0.0
    %1557 = vmatpush1.msra.mxu0 0.0
    %1558 = vmatprep.subr.mxu0 0.0
    %1559 = vmatpush1.msra.mxu0 0.0
    %1560 = vmatprep.subr.mxu0 0.0
    %1561 = vmatpush1.msra.mxu0 0.0
    %1562 = vmatprep.subr.mxu0 0.0
    %1563 = vmatpush1.msra.mxu0 0.0
    %1564 = vmatprep.subr.mxu0 0.0
    %1565 = vmatpush1.msra.mxu0 0.0
    %1566 = vmatprep.subr.mxu0 0.0
    %1567 = vmatpush1.msra.mxu0 0.0
    %1568 = vmatprep.subr.mxu0 0.0
    %1569 = vmatpush1.msra.mxu0 0.0
    %1570 = vmatprep.subr.mxu0 0.0
    %1571 = vmatpush1.msra.mxu0 0.0
    %1572 = vmatprep.subr.mxu0 0.0
    %1573 = vmatpush1.msra.mxu0 0.0
    %1574 = vmatprep.subr.mxu0 0.0
    %1575 = vmatpush1.msra.mxu0 0.0
    %1576 = vmatprep.subr.mxu0 0.0
    %1577 = vmatpush1.msra.mxu0 0.0
    %1578 = vmatprep.subr.mxu0 0.0
    %1579 = vmatpush1.msra.mxu0 0.0
    %1580 = vmatprep.subr.mxu0 0.0
    %1581 = vmatpush1.msra.mxu0 0.0
    %1582 = vmatprep.subr.mxu0 0.0
    %1583 = vmatpush1.msra.mxu0 0.0
    %1584 = vmatprep.subr.mxu0 0.0
    %1585 = vmatpush1.msra.mxu0 0.0
    %1586 = vmatprep.subr.mxu0 0.0
    %1587 = vmatpush1.msra.mxu0 0.0
    %1588 = vmatprep.subr.mxu0 0.0
    %1589 = vmatpush1.msra.mxu0 0.0
    %1590 = vmatprep.subr.mxu0 0.0
    %1591 = vmatpush1.msra.mxu0 0.0
    %1592 = vmatprep.subr.mxu0 0.0
    %1593 = vmatpush1.msra.mxu0 0.0
    %1594 = vmatprep.subr.mxu0 0.0
    %1595 = vmatpush1.msra.mxu0 0.0
    %1596 = vmatprep.subr.mxu0 0.0
    %1597 = vmatpush1.msra.mxu0 0.0
    %1598 = vmatprep.subr.mxu0 0.0
    %1599 = vmatpush1.msra.mxu0 0.0
    %1600 = vmatprep.subr.mxu0 0.0
    %1601 = vmatpush1.msra.mxu0 0.0
    %1602 = vmatprep.subr.mxu0 0.0
    %1603 = vmatpush1.msra.mxu0 0.0
    %1604 = vmatprep.mubr.f32.mxu0 0.0
    %1605 = vmatmul.mubr.f32.gmra.mrb[0].mxu0 %v1532
    %v1606 = vpop.f32.mrb[0].mxu0
    %v1607 = vadd.f32 0.0, %v1606
    %v1608 = vpop.f32.mrb[0].mxu0
    %1609 = vmatprep.mubr.f32.mxu0 0.0
    %1610 = vmatmul.mubr.f32.gmra.mrb[0].mxu0 %v1535
    %v1611 = vpop.f32.mrb[0].mxu0
    %v1612 = vadd.f32 0.0, %v1611
    %v1613 = vpop.f32.mrb[0].mxu0
    %1614 = vmatprep.mubr.f32.mxu0 0.0
    %1615 = vmatmul.mubr.f32.gmra.mrb[0].mxu0 %v1538
    %v1616 = vpop.f32.mrb[0].mxu0
    %v1617 = vadd.f32 0.0, %v1616
    %v1618 = vpop.f32.mrb[0].mxu0
    %1619 = vdwg.mxu0
    %s1620 = scalar_lea.vmem %s10, 96
    %1621 = vst.msk [vmem:[%s1620] sm:$0xff] %vm903, %v1607
    %1622 = vst.msk [vmem:[%s1620 + $0x8] sm:$0xff] %vm903, %v1612
    %1623 = vst.msk [vmem:[%s1620 + $0x10] sm:$0x1] %vm906, %v1617
    %s1624 = scalar_lea.vmem %s5, 80
    %v1625 = vld [vmem:[%s1624] sm:$0xff]
    %v1626 = vld [vmem:[%s1624 + $0x8] sm:$0xf]
    %v1628 = vsel %vm727, %v1626, 0
    %1630 = vmatprep.subr.mxu0 0.0
    %1631 = vmatpush1.msra.mxu0 %v1625
    %1632 = vmatprep.subr.mxu0 0.0
    %1633 = vmatpush1.msra.mxu0 %v1628
    %1634 = vmatprep.subr.mxu0 0.0
    %1635 = vmatpush1.msra.mxu0 0.0
    %1636 = vmatprep.subr.mxu0 0.0
    %1637 = vmatpush1.msra.mxu0 0.0
    %1638 = vmatprep.subr.mxu0 0.0
    %1639 = vmatpush1.msra.mxu0 0.0
    %1640 = vmatprep.subr.mxu0 0.0
    %1641 = vmatpush1.msra.mxu0 0.0
    %1642 = vmatprep.subr.mxu0 0.0
    %1643 = vmatpush1.msra.mxu0 0.0
    %1644 = vmatprep.subr.mxu0 0.0
    %1645 = vmatpush1.msra.mxu0 0.0
    %1646 = vmatprep.subr.mxu0 0.0
    %1647 = vmatpush1.msra.mxu0 0.0
    %1648 = vmatprep.subr.mxu0 0.0
    %1649 = vmatpush1.msra.mxu0 0.0
    %1650 = vmatprep.subr.mxu0 0.0
    %1651 = vmatpush1.msra.mxu0 0.0
    %1652 = vmatprep.subr.mxu0 0.0
    %1653 = vmatpush1.msra.mxu0 0.0
    %1654 = vmatprep.subr.mxu0 0.0
    %1655 = vmatpush1.msra.mxu0 0.0
    %1656 = vmatprep.subr.mxu0 0.0
    %1657 = vmatpush1.msra.mxu0 0.0
    %1658 = vmatprep.subr.mxu0 0.0
    %1659 = vmatpush1.msra.mxu0 0.0
    %1660 = vmatprep.subr.mxu0 0.0
    %1661 = vmatpush1.msra.mxu0 0.0
    %1662 = vmatprep.subr.mxu0 0.0
    %1663 = vmatpush1.msra.mxu0 0.0
    %1664 = vmatprep.subr.mxu0 0.0
    %1665 = vmatpush1.msra.mxu0 0.0
    %1666 = vmatprep.subr.mxu0 0.0
    %1667 = vmatpush1.msra.mxu0 0.0
    %1668 = vmatprep.subr.mxu0 0.0
    %1669 = vmatpush1.msra.mxu0 0.0
    %1670 = vmatprep.subr.mxu0 0.0
    %1671 = vmatpush1.msra.mxu0 0.0
    %1672 = vmatprep.subr.mxu0 0.0
    %1673 = vmatpush1.msra.mxu0 0.0
    %1674 = vmatprep.subr.mxu0 0.0
    %1675 = vmatpush1.msra.mxu0 0.0
    %1676 = vmatprep.subr.mxu0 0.0
    %1677 = vmatpush1.msra.mxu0 0.0
    %1678 = vmatprep.subr.mxu0 0.0
    %1679 = vmatpush1.msra.mxu0 0.0
    %1680 = vmatprep.subr.mxu0 0.0
    %1681 = vmatpush1.msra.mxu0 0.0
    %1682 = vmatprep.subr.mxu0 0.0
    %1683 = vmatpush1.msra.mxu0 0.0
    %1684 = vmatprep.subr.mxu0 0.0
    %1685 = vmatpush1.msra.mxu0 0.0
    %1686 = vmatprep.subr.mxu0 0.0
    %1687 = vmatpush1.msra.mxu0 0.0
    %1688 = vmatprep.subr.mxu0 0.0
    %1689 = vmatpush1.msra.mxu0 0.0
    %1690 = vmatprep.subr.mxu0 0.0
    %1691 = vmatpush1.msra.mxu0 0.0
    %1692 = vmatprep.subr.mxu0 0.0
    %1693 = vmatpush1.msra.mxu0 0.0
    %1694 = vmatprep.mubr.f32.mxu0 0.0
    %1695 = vmatmul.mubr.f32.gmra.mrb[0].mxu0 %v719
    %v1696 = vpop.f32.mrb[0].mxu0
    %v1697 = vadd.f32 0.0, %v1696
    %v1698 = vpop.f32.mrb[0].mxu0
    %1699 = vmatprep.mubr.f32.mxu0 0.0
    %1700 = vmatmul.mubr.f32.gmra.mrb[0].mxu0 %v722
    %v1701 = vpop.f32.mrb[0].mxu0
    %v1702 = vadd.f32 0.0, %v1701
    %v1703 = vpop.f32.mrb[0].mxu0
    %1704 = vmatprep.mubr.f32.mxu0 0.0
    %1705 = vmatmul.mubr.f32.gmra.mrb[0].mxu0 %v725
    %v1706 = vpop.f32.mrb[0].mxu0
    %v1707 = vadd.f32 0.0, %v1706
    %v1708 = vpop.f32.mrb[0].mxu0
    %1709 = vdwg.mxu0
    %v1711 = vsel %vm717, %v1697, 0
    %v1714 = vsel %vm717, %v1702, 0
    %v1717 = vsel %vm717, %v1707, 0
    %1719 = vmatprep.subr.mxu0 0.0
    %1720 = vmatpush1.msra.mxu0 %v713
    %1721 = vmatprep.subr.mxu0 0.0
    %1722 = vmatpush1.msra.mxu0 %v821
    %1723 = vmatprep.subr.mxu0 0.0
    %1724 = vmatpush1.msra.mxu0 0.0
    %1725 = vmatprep.subr.mxu0 0.0
    %1726 = vmatpush1.msra.mxu0 0.0
    %1727 = vmatprep.subr.mxu0 0.0
    %1728 = vmatpush1.msra.mxu0 0.0
    %1729 = vmatprep.subr.mxu0 0.0
    %1730 = vmatpush1.msra.mxu0 0.0
    %1731 = vmatprep.subr.mxu0 0.0
    %1732 = vmatpush1.msra.mxu0 0.0
    %1733 = vmatprep.subr.mxu0 0.0
    %1734 = vmatpush1.msra.mxu0 0.0
    %1735 = vmatprep.subr.mxu0 0.0
    %1736 = vmatpush1.msra.mxu0 0.0
    %1737 = vmatprep.subr.mxu0 0.0
    %1738 = vmatpush1.msra.mxu0 0.0
    %1739 = vmatprep.subr.mxu0 0.0
    %1740 = vmatpush1.msra.mxu0 0.0
    %1741 = vmatprep.subr.mxu0 0.0
    %1742 = vmatpush1.msra.mxu0 0.0
    %1743 = vmatprep.subr.mxu0 0.0
    %1744 = vmatpush1.msra.mxu0 0.0
    %1745 = vmatprep.subr.mxu0 0.0
    %1746 = vmatpush1.msra.mxu0 0.0
    %1747 = vmatprep.subr.mxu0 0.0
    %1748 = vmatpush1.msra.mxu0 0.0
    %1749 = vmatprep.subr.mxu0 0.0
    %1750 = vmatpush1.msra.mxu0 0.0
    %1751 = vmatprep.subr.mxu0 0.0
    %1752 = vmatpush1.msra.mxu0 0.0
    %1753 = vmatprep.subr.mxu0 0.0
    %1754 = vmatpush1.msra.mxu0 0.0
    %1755 = vmatprep.subr.mxu0 0.0
    %1756 = vmatpush1.msra.mxu0 0.0
    %1757 = vmatprep.subr.mxu0 0.0
    %1758 = vmatpush1.msra.mxu0 0.0
    %1759 = vmatprep.subr.mxu0 0.0
    %1760 = vmatpush1.msra.mxu0 0.0
    %1761 = vmatprep.subr.mxu0 0.0
    %1762 = vmatpush1.msra.mxu0 0.0
    %1763 = vmatprep.subr.mxu0 0.0
    %1764 = vmatpush1.msra.mxu0 0.0
    %1765 = vmatprep.subr.mxu0 0.0
    %1766 = vmatpush1.msra.mxu0 0.0
    %1767 = vmatprep.subr.mxu0 0.0
    %1768 = vmatpush1.msra.mxu0 0.0
    %1769 = vmatprep.subr.mxu0 0.0
    %1770 = vmatpush1.msra.mxu0 0.0
    %1771 = vmatprep.subr.mxu0 0.0
    %1772 = vmatpush1.msra.mxu0 0.0
    %1773 = vmatprep.subr.mxu0 0.0
    %1774 = vmatpush1.msra.mxu0 0.0
    %1775 = vmatprep.subr.mxu0 0.0
    %1776 = vmatpush1.msra.mxu0 0.0
    %1777 = vmatprep.subr.mxu0 0.0
    %1778 = vmatpush1.msra.mxu0 0.0
    %1779 = vmatprep.subr.mxu0 0.0
    %1780 = vmatpush1.msra.mxu0 0.0
    %1781 = vmatprep.subr.mxu0 0.0
    %1782 = vmatpush1.msra.mxu0 0.0
    %1783 = vmatprep.mubr.f32.mxu0 0.0
    %1784 = vmatmul.mubr.f32.gmra.mrb[0].mxu0 %v1711
    %v1785 = vpop.f32.mrb[0].mxu0
    %v1786 = vadd.f32 0.0, %v1785
    %v1787 = vpop.f32.mrb[0].mxu0
    %1788 = vmatprep.mubr.f32.mxu0 0.0
    %1789 = vmatmul.mubr.f32.gmra.mrb[0].mxu0 %v1714
    %v1790 = vpop.f32.mrb[0].mxu0
    %v1791 = vadd.f32 0.0, %v1790
    %v1792 = vpop.f32.mrb[0].mxu0
    %1793 = vmatprep.mubr.f32.mxu0 0.0
    %1794 = vmatmul.mubr.f32.gmra.mrb[0].mxu0 %v1717
    %v1795 = vpop.f32.mrb[0].mxu0
    %v1796 = vadd.f32 0.0, %v1795
    %v1797 = vpop.f32.mrb[0].mxu0
    %1798 = vdwg.mxu0
    %s1799 = scalar_lea.vmem %s10, 120
    %1800 = vst.msk [vmem:[%s1799] sm:$0xff] %vm903, %v1786
    %1801 = vst.msk [vmem:[%s1799 + $0x8] sm:$0xff] %vm903, %v1791
    %1802 = vst.msk [vmem:[%s1799 + $0x10] sm:$0x1] %vm906, %v1796
    %s1803 = scalar_lea.vmem %s5, 96
    %v1804 = vld [vmem:[%s1803] sm:$0xff]
    %v1805 = vld [vmem:[%s1803 + $0x8] sm:$0xf]
    %v1807 = vsel %vm727, %v1805, 0
    %1809 = vmatprep.subr.mxu0 0.0
    %1810 = vmatpush1.msra.mxu0 %v1804
    %1811 = vmatprep.subr.mxu0 0.0
    %1812 = vmatpush1.msra.mxu0 %v1807
    %1813 = vmatprep.subr.mxu0 0.0
    %1814 = vmatpush1.msra.mxu0 0.0
    %1815 = vmatprep.subr.mxu0 0.0
    %1816 = vmatpush1.msra.mxu0 0.0
    %1817 = vmatprep.subr.mxu0 0.0
    %1818 = vmatpush1.msra.mxu0 0.0
    %1819 = vmatprep.subr.mxu0 0.0
    %1820 = vmatpush1.msra.mxu0 0.0
    %1821 = vmatprep.subr.mxu0 0.0
    %1822 = vmatpush1.msra.mxu0 0.0
    %1823 = vmatprep.subr.mxu0 0.0
    %1824 = vmatpush1.msra.mxu0 0.0
    %1825 = vmatprep.subr.mxu0 0.0
    %1826 = vmatpush1.msra.mxu0 0.0
    %1827 = vmatprep.subr.mxu0 0.0
    %1828 = vmatpush1.msra.mxu0 0.0
    %1829 = vmatprep.subr.mxu0 0.0
    %1830 = vmatpush1.msra.mxu0 0.0
    %1831 = vmatprep.subr.mxu0 0.0
    %1832 = vmatpush1.msra.mxu0 0.0
    %1833 = vmatprep.subr.mxu0 0.0
    %1834 = vmatpush1.msra.mxu0 0.0
    %1835 = vmatprep.subr.mxu0 0.0
    %1836 = vmatpush1.msra.mxu0 0.0
    %1837 = vmatprep.subr.mxu0 0.0
    %1838 = vmatpush1.msra.mxu0 0.0
    %1839 = vmatprep.subr.mxu0 0.0
    %1840 = vmatpush1.msra.mxu0 0.0
    %1841 = vmatprep.subr.mxu0 0.0
    %1842 = vmatpush1.msra.mxu0 0.0
    %1843 = vmatprep.subr.mxu0 0.0
    %1844 = vmatpush1.msra.mxu0 0.0
    %1845 = vmatprep.subr.mxu0 0.0
    %1846 = vmatpush1.msra.mxu0 0.0
    %1847 = vmatprep.subr.mxu0 0.0
    %1848 = vmatpush1.msra.mxu0 0.0
    %1849 = vmatprep.subr.mxu0 0.0
    %1850 = vmatpush1.msra.mxu0 0.0
    %1851 = vmatprep.subr.mxu0 0.0
    %1852 = vmatpush1.msra.mxu0 0.0
    %1853 = vmatprep.subr.mxu0 0.0
    %1854 = vmatpush1.msra.mxu0 0.0
    %1855 = vmatprep.subr.mxu0 0.0
    %1856 = vmatpush1.msra.mxu0 0.0
    %1857 = vmatprep.subr.mxu0 0.0
    %1858 = vmatpush1.msra.mxu0 0.0
    %1859 = vmatprep.subr.mxu0 0.0
    %1860 = vmatpush1.msra.mxu0 0.0
    %1861 = vmatprep.subr.mxu0 0.0
    %1862 = vmatpush1.msra.mxu0 0.0
    %1863 = vmatprep.subr.mxu0 0.0
    %1864 = vmatpush1.msra.mxu0 0.0
    %1865 = vmatprep.subr.mxu0 0.0
    %1866 = vmatpush1.msra.mxu0 0.0
    %1867 = vmatprep.subr.mxu0 0.0
    %1868 = vmatpush1.msra.mxu0 0.0
    %1869 = vmatprep.subr.mxu0 0.0
    %1870 = vmatpush1.msra.mxu0 0.0
    %1871 = vmatprep.subr.mxu0 0.0
    %1872 = vmatpush1.msra.mxu0 0.0
    %1873 = vmatprep.mubr.f32.mxu0 0.0
    %1874 = vmatmul.mubr.f32.gmra.mrb[0].mxu0 %v719
    %v1875 = vpop.f32.mrb[0].mxu0
    %v1876 = vadd.f32 0.0, %v1875
    %v1877 = vpop.f32.mrb[0].mxu0
    %1878 = vmatprep.mubr.f32.mxu0 0.0
    %1879 = vmatmul.mubr.f32.gmra.mrb[0].mxu0 %v722
    %v1880 = vpop.f32.mrb[0].mxu0
    %v1881 = vadd.f32 0.0, %v1880
    %v1882 = vpop.f32.mrb[0].mxu0
    %1883 = vmatprep.mubr.f32.mxu0 0.0
    %1884 = vmatmul.mubr.f32.gmra.mrb[0].mxu0 %v725
    %v1885 = vpop.f32.mrb[0].mxu0
    %v1886 = vadd.f32 0.0, %v1885
    %v1887 = vpop.f32.mrb[0].mxu0
    %1888 = vdwg.mxu0
    %v1890 = vsel %vm717, %v1876, 0
    %v1893 = vsel %vm717, %v1881, 0
    %v1896 = vsel %vm717, %v1886, 0
    %1898 = vmatprep.subr.mxu0 0.0
    %1899 = vmatpush1.msra.mxu0 %v713
    %1900 = vmatprep.subr.mxu0 0.0
    %1901 = vmatpush1.msra.mxu0 %v821
    %1902 = vmatprep.subr.mxu0 0.0
    %1903 = vmatpush1.msra.mxu0 0.0
    %1904 = vmatprep.subr.mxu0 0.0
    %1905 = vmatpush1.msra.mxu0 0.0
    %1906 = vmatprep.subr.mxu0 0.0
    %1907 = vmatpush1.msra.mxu0 0.0
    %1908 = vmatprep.subr.mxu0 0.0
    %1909 = vmatpush1.msra.mxu0 0.0
    %1910 = vmatprep.subr.mxu0 0.0
    %1911 = vmatpush1.msra.mxu0 0.0
    %1912 = vmatprep.subr.mxu0 0.0
    %1913 = vmatpush1.msra.mxu0 0.0
    %1914 = vmatprep.subr.mxu0 0.0
    %1915 = vmatpush1.msra.mxu0 0.0
    %1916 = vmatprep.subr.mxu0 0.0
    %1917 = vmatpush1.msra.mxu0 0.0
    %1918 = vmatprep.subr.mxu0 0.0
    %1919 = vmatpush1.msra.mxu0 0.0
    %1920 = vmatprep.subr.mxu0 0.0
    %1921 = vmatpush1.msra.mxu0 0.0
    %1922 = vmatprep.subr.mxu0 0.0
    %1923 = vmatpush1.msra.mxu0 0.0
    %1924 = vmatprep.subr.mxu0 0.0
    %1925 = vmatpush1.msra.mxu0 0.0
    %1926 = vmatprep.subr.mxu0 0.0
    %1927 = vmatpush1.msra.mxu0 0.0
    %1928 = vmatprep.subr.mxu0 0.0
    %1929 = vmatpush1.msra.mxu0 0.0
    %1930 = vmatprep.subr.mxu0 0.0
    %1931 = vmatpush1.msra.mxu0 0.0
    %1932 = vmatprep.subr.mxu0 0.0
    %1933 = vmatpush1.msra.mxu0 0.0
    %1934 = vmatprep.subr.mxu0 0.0
    %1935 = vmatpush1.msra.mxu0 0.0
    %1936 = vmatprep.subr.mxu0 0.0
    %1937 = vmatpush1.msra.mxu0 0.0
    %1938 = vmatprep.subr.mxu0 0.0
    %1939 = vmatpush1.msra.mxu0 0.0
    %1940 = vmatprep.subr.mxu0 0.0
    %1941 = vmatpush1.msra.mxu0 0.0
    %1942 = vmatprep.subr.mxu0 0.0
    %1943 = vmatpush1.msra.mxu0 0.0
    %1944 = vmatprep.subr.mxu0 0.0
    %1945 = vmatpush1.msra.mxu0 0.0
    %1946 = vmatprep.subr.mxu0 0.0
    %1947 = vmatpush1.msra.mxu0 0.0
    %1948 = vmatprep.subr.mxu0 0.0
    %1949 = vmatpush1.msra.mxu0 0.0
    %1950 = vmatprep.subr.mxu0 0.0
    %1951 = vmatpush1.msra.mxu0 0.0
    %1952 = vmatprep.subr.mxu0 0.0
    %1953 = vmatpush1.msra.mxu0 0.0
    %1954 = vmatprep.subr.mxu0 0.0
    %1955 = vmatpush1.msra.mxu0 0.0
    %1956 = vmatprep.subr.mxu0 0.0
    %1957 = vmatpush1.msra.mxu0 0.0
    %1958 = vmatprep.subr.mxu0 0.0
    %1959 = vmatpush1.msra.mxu0 0.0
    %1960 = vmatprep.subr.mxu0 0.0
    %1961 = vmatpush1.msra.mxu0 0.0
    %1962 = vmatprep.mubr.f32.mxu0 0.0
    %1963 = vmatmul.mubr.f32.gmra.mrb[0].mxu0 %v1890
    %v1964 = vpop.f32.mrb[0].mxu0
    %v1965 = vadd.f32 0.0, %v1964
    %v1966 = vpop.f32.mrb[0].mxu0
    %1967 = vmatprep.mubr.f32.mxu0 0.0
    %1968 = vmatmul.mubr.f32.gmra.mrb[0].mxu0 %v1893
    %v1969 = vpop.f32.mrb[0].mxu0
    %v1970 = vadd.f32 0.0, %v1969
    %v1971 = vpop.f32.mrb[0].mxu0
    %1972 = vmatprep.mubr.f32.mxu0 0.0
    %1973 = vmatmul.mubr.f32.gmra.mrb[0].mxu0 %v1896
    %v1974 = vpop.f32.mrb[0].mxu0
    %v1975 = vadd.f32 0.0, %v1974
    %v1976 = vpop.f32.mrb[0].mxu0
    %1977 = vdwg.mxu0
    %s1978 = scalar_lea.vmem %s10, 144
    %1979 = vst.msk [vmem:[%s1978] sm:$0xff] %vm903, %v1965
    %1980 = vst.msk [vmem:[%s1978 + $0x8] sm:$0xff] %vm903, %v1970
    %1981 = vst.msk [vmem:[%s1978 + $0x10] sm:$0x1] %vm906, %v1975
    %s1982 = scalar_lea.vmem %s5, 112
    %v1983 = vld [vmem:[%s1982] sm:$0xff]
    %v1984 = vld [vmem:[%s1982 + $0x8] sm:$0xf]
    %v1986 = vsel %vm727, %v1984, 0
    %1988 = vmatprep.subr.mxu0 0.0
    %1989 = vmatpush1.msra.mxu0 %v1983
    %1990 = vmatprep.subr.mxu0 0.0
    %1991 = vmatpush1.msra.mxu0 %v1986
    %1992 = vmatprep.subr.mxu0 0.0
    %1993 = vmatpush1.msra.mxu0 0.0
    %1994 = vmatprep.subr.mxu0 0.0
    %1995 = vmatpush1.msra.mxu0 0.0
    %1996 = vmatprep.subr.mxu0 0.0
    %1997 = vmatpush1.msra.mxu0 0.0
    %1998 = vmatprep.subr.mxu0 0.0
    %1999 = vmatpush1.msra.mxu0 0.0
    %2000 = vmatprep.subr.mxu0 0.0
    %2001 = vmatpush1.msra.mxu0 0.0
    %2002 = vmatprep.subr.mxu0 0.0
    %2003 = vmatpush1.msra.mxu0 0.0
    %2004 = vmatprep.subr.mxu0 0.0
    %2005 = vmatpush1.msra.mxu0 0.0
    %2006 = vmatprep.subr.mxu0 0.0
    %2007 = vmatpush1.msra.mxu0 0.0
    %2008 = vmatprep.subr.mxu0 0.0
    %2009 = vmatpush1.msra.mxu0 0.0
    %2010 = vmatprep.subr.mxu0 0.0
    %2011 = vmatpush1.msra.mxu0 0.0
    %2012 = vmatprep.subr.mxu0 0.0
    %2013 = vmatpush1.msra.mxu0 0.0
    %2014 = vmatprep.subr.mxu0 0.0
    %2015 = vmatpush1.msra.mxu0 0.0
    %2016 = vmatprep.subr.mxu0 0.0
    %2017 = vmatpush1.msra.mxu0 0.0
    %2018 = vmatprep.subr.mxu0 0.0
    %2019 = vmatpush1.msra.mxu0 0.0
    %2020 = vmatprep.subr.mxu0 0.0
    %2021 = vmatpush1.msra.mxu0 0.0
    %2022 = vmatprep.subr.mxu0 0.0
    %2023 = vmatpush1.msra.mxu0 0.0
    %2024 = vmatprep.subr.mxu0 0.0
    %2025 = vmatpush1.msra.mxu0 0.0
    %2026 = vmatprep.subr.mxu0 0.0
    %2027 = vmatpush1.msra.mxu0 0.0
    %2028 = vmatprep.subr.mxu0 0.0
    %2029 = vmatpush1.msra.mxu0 0.0
    %2030 = vmatprep.subr.mxu0 0.0
    %2031 = vmatpush1.msra.mxu0 0.0
    %2032 = vmatprep.subr.mxu0 0.0
    %2033 = vmatpush1.msra.mxu0 0.0
    %2034 = vmatprep.subr.mxu0 0.0
    %2035 = vmatpush1.msra.mxu0 0.0
    %2036 = vmatprep.subr.mxu0 0.0
    %2037 = vmatpush1.msra.mxu0 0.0
    %2038 = vmatprep.subr.mxu0 0.0
    %2039 = vmatpush1.msra.mxu0 0.0
    %2040 = vmatprep.subr.mxu0 0.0
    %2041 = vmatpush1.msra.mxu0 0.0
    %2042 = vmatprep.subr.mxu0 0.0
    %2043 = vmatpush1.msra.mxu0 0.0
    %2044 = vmatprep.subr.mxu0 0.0
    %2045 = vmatpush1.msra.mxu0 0.0
    %2046 = vmatprep.subr.mxu0 0.0
    %2047 = vmatpush1.msra.mxu0 0.0
    %2048 = vmatprep.subr.mxu0 0.0
    %2049 = vmatpush1.msra.mxu0 0.0
    %2050 = vmatprep.subr.mxu0 0.0
    %2051 = vmatpush1.msra.mxu0 0.0
    %2052 = vmatprep.mubr.f32.mxu0 0.0
    %2053 = vmatmul.mubr.f32.gmra.mrb[0].mxu0 %v719
    %v2054 = vpop.f32.mrb[0].mxu0
    %v2055 = vadd.f32 0.0, %v2054
    %v2056 = vpop.f32.mrb[0].mxu0
    %2057 = vmatprep.mubr.f32.mxu0 0.0
    %2058 = vmatmul.mubr.f32.gmra.mrb[0].mxu0 %v722
    %v2059 = vpop.f32.mrb[0].mxu0
    %v2060 = vadd.f32 0.0, %v2059
    %v2061 = vpop.f32.mrb[0].mxu0
    %2062 = vmatprep.mubr.f32.mxu0 0.0
    %2063 = vmatmul.mubr.f32.gmra.mrb[0].mxu0 %v725
    %v2064 = vpop.f32.mrb[0].mxu0
    %v2065 = vadd.f32 0.0, %v2064
    %v2066 = vpop.f32.mrb[0].mxu0
    %2067 = vdwg.mxu0
    %v2069 = vsel %vm717, %v2055, 0
    %v2072 = vsel %vm717, %v2060, 0
    %v2075 = vsel %vm717, %v2065, 0
    %2077 = vmatprep.subr.mxu0 0.0
    %2078 = vmatpush1.msra.mxu0 %v713
    %2079 = vmatprep.subr.mxu0 0.0
    %2080 = vmatpush1.msra.mxu0 %v821
    %2081 = vmatprep.subr.mxu0 0.0
    %2082 = vmatpush1.msra.mxu0 0.0
    %2083 = vmatprep.subr.mxu0 0.0
    %2084 = vmatpush1.msra.mxu0 0.0
    %2085 = vmatprep.subr.mxu0 0.0
    %2086 = vmatpush1.msra.mxu0 0.0
    %2087 = vmatprep.subr.mxu0 0.0
    %2088 = vmatpush1.msra.mxu0 0.0
    %2089 = vmatprep.subr.mxu0 0.0
    %2090 = vmatpush1.msra.mxu0 0.0
    %2091 = vmatprep.subr.mxu0 0.0
    %2092 = vmatpush1.msra.mxu0 0.0
    %2093 = vmatprep.subr.mxu0 0.0
    %2094 = vmatpush1.msra.mxu0 0.0
    %2095 = vmatprep.subr.mxu0 0.0
    %2096 = vmatpush1.msra.mxu0 0.0
    %2097 = vmatprep.subr.mxu0 0.0
    %2098 = vmatpush1.msra.mxu0 0.0
    %2099 = vmatprep.subr.mxu0 0.0
    %2100 = vmatpush1.msra.mxu0 0.0
    %2101 = vmatprep.subr.mxu0 0.0
    %2102 = vmatpush1.msra.mxu0 0.0
    %2103 = vmatprep.subr.mxu0 0.0
    %2104 = vmatpush1.msra.mxu0 0.0
    %2105 = vmatprep.subr.mxu0 0.0
    %2106 = vmatpush1.msra.mxu0 0.0
    %2107 = vmatprep.subr.mxu0 0.0
    %2108 = vmatpush1.msra.mxu0 0.0
    %2109 = vmatprep.subr.mxu0 0.0
    %2110 = vmatpush1.msra.mxu0 0.0
    %2111 = vmatprep.subr.mxu0 0.0
    %2112 = vmatpush1.msra.mxu0 0.0
    %2113 = vmatprep.subr.mxu0 0.0
    %2114 = vmatpush1.msra.mxu0 0.0
    %2115 = vmatprep.subr.mxu0 0.0
    %2116 = vmatpush1.msra.mxu0 0.0
    %2117 = vmatprep.subr.mxu0 0.0
    %2118 = vmatpush1.msra.mxu0 0.0
    %2119 = vmatprep.subr.mxu0 0.0
    %2120 = vmatpush1.msra.mxu0 0.0
    %2121 = vmatprep.subr.mxu0 0.0
    %2122 = vmatpush1.msra.mxu0 0.0
    %2123 = vmatprep.subr.mxu0 0.0
    %2124 = vmatpush1.msra.mxu0 0.0
    %2125 = vmatprep.subr.mxu0 0.0
    %2126 = vmatpush1.msra.mxu0 0.0
    %2127 = vmatprep.subr.mxu0 0.0
    %2128 = vmatpush1.msra.mxu0 0.0
    %2129 = vmatprep.subr.mxu0 0.0
    %2130 = vmatpush1.msra.mxu0 0.0
    %2131 = vmatprep.subr.mxu0 0.0
    %2132 = vmatpush1.msra.mxu0 0.0
    %2133 = vmatprep.subr.mxu0 0.0
    %2134 = vmatpush1.msra.mxu0 0.0
    %2135 = vmatprep.subr.mxu0 0.0
    %2136 = vmatpush1.msra.mxu0 0.0
    %2137 = vmatprep.subr.mxu0 0.0
    %2138 = vmatpush1.msra.mxu0 0.0
    %2139 = vmatprep.subr.mxu0 0.0
    %2140 = vmatpush1.msra.mxu0 0.0
    %2141 = vmatprep.mubr.f32.mxu0 0.0
    %2142 = vmatmul.mubr.f32.gmra.mrb[0].mxu0 %v2069
    %v2143 = vpop.f32.mrb[0].mxu0
    %v2144 = vadd.f32 0.0, %v2143
    %v2145 = vpop.f32.mrb[0].mxu0
    %2146 = vmatprep.mubr.f32.mxu0 0.0
    %2147 = vmatmul.mubr.f32.gmra.mrb[0].mxu0 %v2072
    %v2148 = vpop.f32.mrb[0].mxu0
    %v2149 = vadd.f32 0.0, %v2148
    %v2150 = vpop.f32.mrb[0].mxu0
    %2151 = vmatprep.mubr.f32.mxu0 0.0
    %2152 = vmatmul.mubr.f32.gmra.mrb[0].mxu0 %v2075
    %v2153 = vpop.f32.mrb[0].mxu0
    %v2154 = vadd.f32 0.0, %v2153
    %v2155 = vpop.f32.mrb[0].mxu0
    %2156 = vdwg.mxu0
    %s2157 = scalar_lea.vmem %s10, 168
    %2158 = vst.msk [vmem:[%s2157] sm:$0xff] %vm903, %v2144
    %2159 = vst.msk [vmem:[%s2157 + $0x8] sm:$0xff] %vm903, %v2149
    %2160 = vst.msk [vmem:[%s2157 + $0x10] sm:$0x1] %vm906, %v2154
    // Predicated region
    $region34: #{forward.1} parent=1 // pred_check
      _
    $region35: #{forward.1} parent=1 // pred_check_branch
      %2162 = sbr.rel (0) target = $region37
    $region36: #{forward.1} parent=1 // pred_region
      %s2164 = ssub.s32 32, 32
      %2165 = vsyncadd [#allocation3], %s2164
      %s2167 = sshll.u32 [#allocation2], 4
      %s2168 = int_to_ptr.vmem [resolvable:$true] %s2167
      %2170 = dma.vmem_to_hbm [thread:$0]  %s2168, 32, %s8, [#allocation3]
    $region37: #{forward.1} parent=1 // pred_fallthru
      _
    // Predicated region
    $region38: #{forward.1} parent=1 // pred_check
      _
    $region39: #{forward.1} parent=1 // pred_check_branch
      %2172 = sbr.rel (0) target = $region41
    $region40: #{forward.1} parent=1 // pred_region
      %s2174 = ssub.s32 1536, 1536
      %2175 = vsyncadd [#allocation5], %s2174
      %s2176 = sshll.u32 [#allocation4], 4
      %s2177 = int_to_ptr.vmem [resolvable:$true] %s2176
      %2182 = dma.vmem_to_hbm [thread:$0]  %s2177, 1536, %s9, [#allocation5], 128, 128, 8
    $region41: #{forward.1} parent=1 // pred_fallthru
      _
    // Predicated region
    $region42: #{forward.1} parent=1 // pred_check
      _
    $region43: #{forward.1} parent=1 // pred_check_branch
      %2184 = sbr.rel (0) target = $region45
    $region44: #{forward.1} parent=1 // pred_region
      _
    $region45: #{forward.1} parent=1 // pred_fallthru
      _
    // Predicated region
    $region46: #{forward.1} parent=1 // pred_check
      _
    $region47: #{forward.1} parent=1 // pred_check_branch
      %2186 = sbr.rel (0) target = $region49
    $region48: #{forward.1} parent=1 // pred_region
      %2187 = dma.done [#allocation3], 32
    $region49: #{forward.1} parent=1 // pred_fallthru
      _
    // Predicated region
    $region50: #{forward.1} parent=1 // pred_check
      _
    $region51: #{forward.1} parent=1 // pred_check_branch
      %2189 = sbr.rel (0) target = $region53
    $region52: #{forward.1} parent=1 // pred_region
      %2190 = dma.done [#allocation5], 1536
    $region53: #{forward.1} parent=1 // pred_fallthru
      _
    // Predicated region
    $region54: #{forward.1} parent=1 // pred_check
      _
    $region55: #{forward.1} parent=1 // pred_check_branch
      %2192 = sbr.rel (0) target = $region57
    $region56: #{forward.1} parent=1 // pred_region
      _
    $region57: #{forward.1} parent=1 // pred_fallthru
      _
    %2193 = vsyncpa [#allocation3], 1
    %2194 = vsyncpa [#allocation5], 1

</llo_original>
